<compile_context>
chip_gen: v5e
topology: v5e:2x2
jax: 0.10.0
libtpu: 0.0.40
codegen_flags: <defaults>
</compile_context>

<pallas_src>
import jax
import jax.numpy as jnp
from jax.experimental import pallas as pl
from jax.experimental.pallas import tpu as pltpu

D_IN = 28 * 28      # 784
HIDDEN = 512
D_OUT = 10
D_OUT_PAD = 128     # lane-dense output block; wrapper slices back to 10
TB_MAX = 512        # batch-tile cap: amortizes ~0.35us/step grid overhead, fits v5e VMEM


def _round_up(n, m):
    return (n + m - 1) // m * m


def _choose_tb(batch):
    """Batch tile: multiple of 16 (full bf16 sublane packing), roughly half the batch so
    moderate batches give >=2 grid steps (keeps both v7x TCs busy), capped at TB_MAX."""
    half = max((batch + 1) // 2, 1)
    return min(TB_MAX, _round_up(half, 16))


def mlp_kernel(x_ref, w1_ref, b1_ref, w2_ref, b2_ref, w3_ref, b3_ref, o_ref):
    # In-kernel f32 -> bf16 cast of the activations (cheap VPU op hidden under MXU/DMA).
    x = x_ref[...].astype(jnp.bfloat16)                                   # (tb, 784)
    # Layer 1: Linear(784 -> 512) + ReLU.  bf16 MXU operands, f32 accumulation.
    h1 = jnp.dot(x, w1_ref[...], preferred_element_type=jnp.float32) + b1_ref[...]
    h1 = jnp.maximum(h1, 0.0).astype(jnp.bfloat16)
    # Layer 2: Linear(512 -> 512) + ReLU.
    h2 = jnp.dot(h1, w2_ref[...], preferred_element_type=jnp.float32) + b2_ref[...]
    h2 = jnp.maximum(h2, 0.0).astype(jnp.bfloat16)
    # Layer 3: Linear(512 -> 10), lane-padded to 128 zero columns.  f32 accumulate,
    # bf16 store (halves the padded-output HBM write; wrapper casts back to f32).
    out = jnp.dot(h2, w3_ref[...], preferred_element_type=jnp.float32) + b3_ref[...]
    o_ref[...] = out.astype(o_ref.dtype)


def init_params(key):
    """f32 params mimicking PyTorch nn.Linear init (U(+-1/sqrt(fan_in))), stored (in, out)."""
    def linear_params(k, fan_in, fan_out):
        kw, kb = jax.random.split(k)
        bound = 1.0 / jnp.sqrt(fan_in)
        w_pt = jax.random.uniform(kw, (fan_out, fan_in), jnp.float32, -bound, bound)
        b = jax.random.uniform(kb, (1, fan_out), jnp.float32, -bound, bound)
        return w_pt.T, b  # transpose so the kernel computes x @ W

    k1, k2, k3 = jax.random.split(key, 3)
    w1, b1 = linear_params(k1, D_IN, HIDDEN)
    w2, b2 = linear_params(k2, HIDDEN, HIDDEN)
    w3, b3 = linear_params(k3, HIDDEN, D_OUT)
    return (w1, b1, w2, b2, w3, b3)


def prepare_kernel_params(params):
    """Cast weights to bf16 (biases stay f32); zero-pad layer-3 output columns to 128."""
    w1, b1, w2, b2, w3, b3 = params
    w1p = w1.astype(jnp.bfloat16)                               # (784, 512)
    w2p = w2.astype(jnp.bfloat16)                               # (512, 512)
    w3p = jnp.zeros((HIDDEN, D_OUT_PAD), jnp.bfloat16).at[:, :D_OUT].set(w3.astype(jnp.bfloat16))
    b3p = jnp.zeros((1, D_OUT_PAD), jnp.float32).at[:, :D_OUT].set(b3)
    return (w1p, b1, w2p, b2, w3p, b3p)


def neural_network_forward(x, kparams):
    """x: (B, 28, 28) float32.  kparams: from prepare_kernel_params.  Returns (B, 10) f32."""
    w1p, b1, w2p, b2, w3p, b3p = kparams
    B = x.shape[0]

    # nn.Flatten -- metadata-only reshape, no HBM copy.
    x_flat = x.reshape(B, D_IN)

    tb = _choose_tb(B)
    num_blocks = pl.cdiv(B, tb)
    b_out = num_blocks * tb  # output rows padded to whole blocks -> only full, unmasked stores

    const = lambda i: (0, 0)  # weights/biases: same block every step -> VMEM-resident
    out = pl.pallas_call(
        mlp_kernel,
        out_shape=jax.ShapeDtypeStruct((b_out, D_OUT_PAD), jnp.bfloat16),
        grid=(num_blocks,),
        in_specs=[
            pl.BlockSpec((tb, D_IN), lambda i: (i, 0)),   # x: batch-tiled f32, pipelined
            pl.BlockSpec((D_IN, HIDDEN), const),          # w1 (bf16)
            pl.BlockSpec((1, HIDDEN), const),             # b1 (f32)
            pl.BlockSpec((HIDDEN, HIDDEN), const),        # w2 (bf16)
            pl.BlockSpec((1, HIDDEN), const),             # b2 (f32)
            pl.BlockSpec((HIDDEN, D_OUT_PAD), const),     # w3 (bf16, zero-padded cols)
            pl.BlockSpec((1, D_OUT_PAD), const),          # b3 (f32, zero-padded cols)
        ],
        out_specs=pl.BlockSpec((tb, D_OUT_PAD), lambda i: (i, 0)),
        compiler_params=pltpu.CompilerParams(
            dimension_semantics=("parallel",)),
    )(x_flat, w1p, b1, w2p, b2, w3p, b3p)

    return out[:B, :D_OUT].astype(jnp.float32)


def reference_forward(x, params):
    """Pure-JAX f32 reference for correctness check."""
    w1, b1, w2, b2, w3, b3 = params
    h = x.reshape(x.shape[0], -1)
    h = jnp.maximum(h @ w1 + b1, 0.0)
    h = jnp.maximum(h @ w2 + b2, 0.0)
    return h @ w3 + b3


if __name__ == "__main__":
    key = jax.random.PRNGKey(0)
    k_x, k_p = jax.random.split(key)

    B = 2
    x = jax.random.uniform(k_x, (B, 28, 28), jnp.float32)  # like torch.rand(B, 28, 28)
    params = init_params(k_p)
    kparams = prepare_kernel_params(params)

    logits = neural_network_forward(x, kparams)
    logits = jax.block_until_ready(logits)

    ref = reference_forward(x, params)
    assert logits.shape == (B, D_OUT)
    max_err = float(jnp.max(jnp.abs(logits - ref)))
    # bf16 weights/activations (f32 accumulation) + bf16 logit store -> loosened tolerance.
    assert jnp.allclose(logits, ref, atol=5e-2, rtol=5e-2), f"mismatch vs reference (max abs err {max_err})"

    print("KERNEL_OK")
</pallas_src>

<mosaic_0001>
module attributes {stable_mosaic.version = 11 : i64} {
  func.func @mlp_kernel(%arg0: i32, %arg1: memref<16x784xf32, #tpu.memory_space<vmem>>, %arg2: memref<784x512xbf16, #tpu.memory_space<vmem>>, %arg3: memref<1x512xf32, #tpu.memory_space<vmem>>, %arg4: memref<512x512xbf16, #tpu.memory_space<vmem>>, %arg5: memref<1x512xf32, #tpu.memory_space<vmem>>, %arg6: memref<512x128xbf16, #tpu.memory_space<vmem>>, %arg7: memref<1x128xf32, #tpu.memory_space<vmem>>, %arg8: memref<16x128xbf16, #tpu.memory_space<vmem>>) attributes {dimension_semantics = [#tpu.dimension_semantics<parallel>], iteration_bounds = array<i64: 1>, scalar_prefetch = 0 : i64, scratch_operands = 0 : i64, tpu.core_type = #tpu.core_type<tc>, window_params = [{transform_indices = @transform_0, window_bounds = array<i64: 16, 784>}, {pipeline_mode = #tpu.pipeline_mode<synchronous>, transform_indices = @transform_1, window_bounds = array<i64: 784, 512>}, {pipeline_mode = #tpu.pipeline_mode<synchronous>, transform_indices = @transform_2, window_bounds = array<i64: 1, 512>}, {pipeline_mode = #tpu.pipeline_mode<synchronous>, transform_indices = @transform_3, window_bounds = array<i64: 512, 512>}, {pipeline_mode = #tpu.pipeline_mode<synchronous>, transform_indices = @transform_4, window_bounds = array<i64: 1, 512>}, {pipeline_mode = #tpu.pipeline_mode<synchronous>, transform_indices = @transform_5, window_bounds = array<i64: 512, 128>}, {pipeline_mode = #tpu.pipeline_mode<synchronous>, transform_indices = @transform_6, window_bounds = array<i64: 1, 128>}, {transform_indices = @transform_7, window_bounds = array<i64: 16, 128>}]} {
    %c0 = arith.constant 0 : index
    %c0_0 = arith.constant 0 : index
    %0 = vector.load %arg1[%c0, %c0_0] : memref<16x784xf32, #tpu.memory_space<vmem>>, vector<16x784xf32>
    %1 = arith.truncf %0 : vector<16x784xf32> to vector<16x784xbf16>
    %c0_1 = arith.constant 0 : index
    %c0_2 = arith.constant 0 : index
    %2 = vector.load %arg2[%c0_1, %c0_2] : memref<784x512xbf16, #tpu.memory_space<vmem>>, vector<784x512xbf16>
    %cst = arith.constant dense<0.000000e+00> : vector<16x512xf32>
    %3 = tpu.matmul %1, %2, %cst {dimension_numbers = #tpu.dot_dimension_numbers<[1], [0], [0], [1], [0, 0, 1, 1], [], []>} : vector<16x784xbf16>, vector<784x512xbf16>, vector<16x512xf32> -> vector<16x512xf32>
    %c0_3 = arith.constant 0 : index
    %c0_4 = arith.constant 0 : index
    %4 = vector.load %arg3[%c0_3, %c0_4] : memref<1x512xf32, #tpu.memory_space<vmem>>, vector<1x512xf32>
    %5 = vector.broadcast %4 : vector<1x512xf32> to vector<16x512xf32>
    %6 = arith.addf %3, %5 : vector<16x512xf32>
    %cst_5 = arith.constant 0.000000e+00 : f32
    %7 = vector.broadcast %cst_5 : f32 to vector<16x512xf32>
    %8 = arith.maximumf %6, %7 : vector<16x512xf32>
    %9 = arith.truncf %8 : vector<16x512xf32> to vector<16x512xbf16>
    %c0_6 = arith.constant 0 : index
    %c0_7 = arith.constant 0 : index
    %10 = vector.load %arg4[%c0_6, %c0_7] : memref<512x512xbf16, #tpu.memory_space<vmem>>, vector<512x512xbf16>
    %cst_8 = arith.constant dense<0.000000e+00> : vector<16x512xf32>
    %11 = tpu.matmul %9, %10, %cst_8 {dimension_numbers = #tpu.dot_dimension_numbers<[1], [0], [0], [1], [0, 0, 1, 1], [], []>} : vector<16x512xbf16>, vector<512x512xbf16>, vector<16x512xf32> -> vector<16x512xf32>
    %c0_9 = arith.constant 0 : index
    %c0_10 = arith.constant 0 : index
    %12 = vector.load %arg5[%c0_9, %c0_10] : memref<1x512xf32, #tpu.memory_space<vmem>>, vector<1x512xf32>
    %13 = vector.broadcast %12 : vector<1x512xf32> to vector<16x512xf32>
    %14 = arith.addf %11, %13 : vector<16x512xf32>
    %cst_11 = arith.constant 0.000000e+00 : f32
    %15 = vector.broadcast %cst_11 : f32 to vector<16x512xf32>
    %16 = arith.maximumf %14, %15 : vector<16x512xf32>
    %17 = arith.truncf %16 : vector<16x512xf32> to vector<16x512xbf16>
    %c0_12 = arith.constant 0 : index
    %c0_13 = arith.constant 0 : index
    %18 = vector.load %arg6[%c0_12, %c0_13] : memref<512x128xbf16, #tpu.memory_space<vmem>>, vector<512x128xbf16>
    %cst_14 = arith.constant dense<0.000000e+00> : vector<16x128xf32>
    %19 = tpu.matmul %17, %18, %cst_14 {dimension_numbers = #tpu.dot_dimension_numbers<[1], [0], [0], [1], [0, 0, 1, 1], [], []>} : vector<16x512xbf16>, vector<512x128xbf16>, vector<16x128xf32> -> vector<16x128xf32>
    %c0_15 = arith.constant 0 : index
    %c0_16 = arith.constant 0 : index
    %20 = vector.load %arg7[%c0_15, %c0_16] : memref<1x128xf32, #tpu.memory_space<vmem>>, vector<1x128xf32>
    %21 = vector.broadcast %20 : vector<1x128xf32> to vector<16x128xf32>
    %22 = arith.addf %19, %21 : vector<16x128xf32>
    %23 = arith.truncf %22 : vector<16x128xf32> to vector<16x128xbf16>
    %c0_17 = arith.constant 0 : index
    %c0_18 = arith.constant 0 : index
    %24 = vector.load %arg8[%c0_17, %c0_18] : memref<16x128xbf16, #tpu.memory_space<vmem>>, vector<16x128xbf16>
    tpu.vector_store %arg8[%c0_17, %c0_18], %23 {strides = array<i32>} : memref<16x128xbf16, #tpu.memory_space<vmem>>, vector<16x128xbf16>,
    return
  }
  func.func @transform_0(%arg0: i32) -> (i32, i32) {
    %c0_i32 = arith.constant 0 : i32
    %c0_i32_0 = arith.constant 0 : i32
    return %arg0, %c0_i32 : i32, i32
  }
  func.func @transform_1(%arg0: i32) -> (i32, i32) {
    %c0_i32 = arith.constant 0 : i32
    %c0_i32_0 = arith.constant 0 : i32
    %c0_i32_1 = arith.constant 0 : i32
    return %c0_i32, %c0_i32_0 : i32, i32
  }
  func.func @transform_2(%arg0: i32) -> (i32, i32) {
    %c0_i32 = arith.constant 0 : i32
    %c0_i32_0 = arith.constant 0 : i32
    %c0_i32_1 = arith.constant 0 : i32
    return %c0_i32, %c0_i32_0 : i32, i32
  }
  func.func @transform_3(%arg0: i32) -> (i32, i32) {
    %c0_i32 = arith.constant 0 : i32
    %c0_i32_0 = arith.constant 0 : i32
    %c0_i32_1 = arith.constant 0 : i32
    return %c0_i32, %c0_i32_0 : i32, i32
  }
  func.func @transform_4(%arg0: i32) -> (i32, i32) {
    %c0_i32 = arith.constant 0 : i32
    %c0_i32_0 = arith.constant 0 : i32
    %c0_i32_1 = arith.constant 0 : i32
    return %c0_i32, %c0_i32_0 : i32, i32
  }
  func.func @transform_5(%arg0: i32) -> (i32, i32) {
    %c0_i32 = arith.constant 0 : i32
    %c0_i32_0 = arith.constant 0 : i32
    %c0_i32_1 = arith.constant 0 : i32
    return %c0_i32, %c0_i32_0 : i32, i32
  }
  func.func @transform_6(%arg0: i32) -> (i32, i32) {
    %c0_i32 = arith.constant 0 : i32
    %c0_i32_0 = arith.constant 0 : i32
    %c0_i32_1 = arith.constant 0 : i32
    return %c0_i32, %c0_i32_0 : i32, i32
  }
  func.func @transform_7(%arg0: i32) -> (i32, i32) {
    %c0_i32 = arith.constant 0 : i32
    %c0_i32_0 = arith.constant 0 : i32
    return %arg0, %c0_i32 : i32, i32
  }
}

</mosaic_0001>

<llo_original>
// kernel: tpu_custom_call.1
$region0: #{tpu_custom_call.1}
  #allocation0 [shape = 'u32[]', space=smem, size = 0x4, offset = 0x4, fixed_abs, tag = 'smem constant byte address 0x4 - core index']
  #allocation1 [shape = 'u32[72,128]{1,0:T(1,128)}', space=vmem, size = 0x9000, scoped, tag = 'internal scratch']
  %s0 = inlined_call_operand.hbm [shape: f32[2,784], index: 0, kind: input, shape index: {}]
  %s1 = inlined_call_operand.hbm [shape: bf16[784,512], index: 1, kind: input, shape index: {}]
  %s2 = inlined_call_operand.hbm [shape: f32[1,512], index: 2, kind: input, shape index: {}]
  %s3 = inlined_call_operand.hbm [shape: bf16[512,512], index: 3, kind: input, shape index: {}]
  %s4 = inlined_call_operand.hbm [shape: f32[1,512], index: 4, kind: input, shape index: {}]
  %s5 = inlined_call_operand.hbm [shape: bf16[512,128], index: 5, kind: input, shape index: {}]
  %s6 = inlined_call_operand.vmem [shape: f32[1,128], index: 6, kind: input, shape index: {}]
  %s7 = inlined_call_operand.hbm [shape: bf16[16,128], index: 7, kind: output, shape index: {}]
  %s8 = sld [smem:[#allocation0]]
  $region62: #{tpu_custom_call.1} parent=0
    _
  %s10 = ssub.s32 1, %s8
  %s11 = scalar_select 0, %s10, %s8
  $region1: #{tpu_custom_call.1} parent=0
    #allocation2 [shape = 'u8[57344]{0}', space=vmem, size = 0xe000, scoped, tag = 'input window, operand 0, single buffered']
    #allocation3 [shape = 's32[1]{0}', space=sflag, size = 0x4, scoped, tag = 'scoped memory for tpu_custom_call.1']
    #allocation4 [shape = 's32[1]{0}', space=sflag, size = 0x4, scoped, tag = 'scoped memory for tpu_custom_call.1']
    #allocation5 [shape = 'u8[802816]{0}', space=vmem, size = 0xc4000, scoped, tag = 'input window, operand 1, single buffered']
    #allocation6 [shape = 's32[1]{0}', space=sflag, size = 0x4, scoped, tag = 'scoped memory for tpu_custom_call.1']
    #allocation7 [shape = 'u8[2048]{0}', space=vmem, size = 0x800, scoped, tag = 'input window, operand 2, single buffered']
    #allocation8 [shape = 'u8[524288]{0}', space=vmem, size = 0x80000, scoped, tag = 'input window, operand 3, single buffered']
    #allocation9 [shape = 's32[1]{0}', space=sflag, size = 0x4, scoped, tag = 'scoped memory for tpu_custom_call.1']
    #allocation10 [shape = 'u8[2048]{0}', space=vmem, size = 0x800, scoped, tag = 'input window, operand 4, single buffered']
    #allocation11 [shape = 'u8[131072]{0}', space=vmem, size = 0x20000, scoped, tag = 'input window, operand 5, single buffered']
    #allocation12 [shape = 's32[1]{0}', space=sflag, size = 0x4, scoped, tag = 'scoped memory for tpu_custom_call.1']
    #allocation13 [shape = 'u8[4096]{0}', space=vmem, size = 0x1000, scoped, tag = 'output window, operand 0, single buffered']
    %12 = vsyncpa [#allocation3], 0
    %13 = vsyncpa [#allocation6], 0
    %14 = vsyncpa [#allocation9], 0
    %15 = vsyncpa [#allocation12], 0
    %16 = vsyncpa [#allocation4], 0
    // Predicated region
    $region2: #{tpu_custom_call.1} parent=1 // pred_check
      _
    $region3: #{tpu_custom_call.1} parent=1 // pred_check_branch
      %18 = sbr.rel (0) target = $region5
    $region4: #{tpu_custom_call.1} parent=1 // pred_region
      %20 = vsyncadd [#allocation3], 1568
      %s21 = sshll.u32 %s0, 4
      %s22 = int_to_ptr.hbm [resolvable:$true] %s21
      %s23 = sshll.u32 [#allocation2], 4
      %s24 = int_to_ptr.vmem [resolvable:$true] %s23
      %29 = dma.hbm_to_vmem [thread:$0]  %s22, 224, %s24, [#allocation3], 224, 224, 14
    $region5: #{tpu_custom_call.1} parent=1 // pred_fallthru
      _
    // Predicated region
    $region6: #{tpu_custom_call.1} parent=1 // pred_check
      _
    $region7: #{tpu_custom_call.1} parent=1 // pred_check_branch
      %31 = sbr.rel (0) target = $region9
    $region8: #{tpu_custom_call.1} parent=1 // pred_region
      %33 = vsyncadd [#allocation6], 0
      %s34 = sshll.u32 %s1, 4
      %s35 = int_to_ptr.hbm [resolvable:$true] %s34
      %s36 = sshll.u32 [#allocation5], 4
      %s37 = int_to_ptr.vmem [resolvable:$true] %s36
      %42 = dma.hbm_to_vmem [thread:$0]  %s35, 25088, %s37, [#allocation6], 256, 256, 16
    $region9: #{tpu_custom_call.1} parent=1 // pred_fallthru
      _
    // Predicated region
    $region10: #{tpu_custom_call.1} parent=1 // pred_check
      _
    $region11: #{tpu_custom_call.1} parent=1 // pred_check_branch
      %44 = sbr.rel (0) target = $region13
    $region12: #{tpu_custom_call.1} parent=1 // pred_region
      %46 = vsyncadd [#allocation6], 0
      %s48 = sshll.u32 %s2, 4
      %s49 = int_to_ptr.hbm [resolvable:$true] %s48
      %s50 = sshll.u32 [#allocation7], 4
      %s51 = int_to_ptr.vmem [resolvable:$true] %s50
      %53 = dma.hbm_to_vmem [thread:$0]  %s49, 64, %s51, [#allocation6]
    $region13: #{tpu_custom_call.1} parent=1 // pred_fallthru
      _
    // Predicated region
    $region14: #{tpu_custom_call.1} parent=1 // pred_check
      _
    $region15: #{tpu_custom_call.1} parent=1 // pred_check_branch
      %55 = sbr.rel (0) target = $region17
    $region16: #{tpu_custom_call.1} parent=1 // pred_region
      %57 = vsyncadd [#allocation9], 0
      %s58 = sshll.u32 %s3, 4
      %s59 = int_to_ptr.hbm [resolvable:$true] %s58
      %s60 = sshll.u32 [#allocation8], 4
      %s61 = int_to_ptr.vmem [resolvable:$true] %s60
      %66 = dma.hbm_to_vmem [thread:$0]  %s59, 16384, %s61, [#allocation9], 256, 256, 16
    $region17: #{tpu_custom_call.1} parent=1 // pred_fallthru
      _
    // Predicated region
    $region18: #{tpu_custom_call.1} parent=1 // pred_check
      _
    $region19: #{tpu_custom_call.1} parent=1 // pred_check_branch
      %68 = sbr.rel (0) target = $region21
    $region20: #{tpu_custom_call.1} parent=1 // pred_region
      %70 = vsyncadd [#allocation9], 0
      %s72 = sshll.u32 %s4, 4
      %s73 = int_to_ptr.hbm [resolvable:$true] %s72
      %s74 = sshll.u32 [#allocation10], 4
      %s75 = int_to_ptr.vmem [resolvable:$true] %s74
      %77 = dma.hbm_to_vmem [thread:$0]  %s73, 64, %s75, [#allocation9]
    $region21: #{tpu_custom_call.1} parent=1 // pred_fallthru
      _
    // Predicated region
    $region22: #{tpu_custom_call.1} parent=1 // pred_check
      _
    $region23: #{tpu_custom_call.1} parent=1 // pred_check_branch
      %79 = sbr.rel (0) target = $region25
    $region24: #{tpu_custom_call.1} parent=1 // pred_region
      %81 = vsyncadd [#allocation12], 0
      %s82 = sshll.u32 %s5, 4
      %s83 = int_to_ptr.hbm [resolvable:$true] %s82
      %s84 = sshll.u32 [#allocation11], 4
      %s85 = int_to_ptr.vmem [resolvable:$true] %s84
      %90 = dma.hbm_to_vmem [thread:$0]  %s83, 4096, %s85, [#allocation12], 64, 64, 4
    $region25: #{tpu_custom_call.1} parent=1 // pred_fallthru
      _
    // Predicated region
    $region26: #{tpu_custom_call.1} parent=1 // pred_check
      _
    $region27: #{tpu_custom_call.1} parent=1 // pred_check_branch
      %92 = sbr.rel (0) target = $region29
    $region28: #{tpu_custom_call.1} parent=1 // pred_region
      _
    $region29: #{tpu_custom_call.1} parent=1 // pred_fallthru
      _
    // Predicated region
    $region30: #{tpu_custom_call.1} parent=1 // pred_check
      _
    $region31: #{tpu_custom_call.1} parent=1 // pred_check_branch
      %94 = sbr.rel (0) target = $region33
    $region32: #{tpu_custom_call.1} parent=1 // pred_region
      %96 = dma.done [#allocation3], 1792
    $region33: #{tpu_custom_call.1} parent=1 // pred_fallthru
      _
    // Predicated region
    $region34: #{tpu_custom_call.1} parent=1 // pred_check
      _
    $region35: #{tpu_custom_call.1} parent=1 // pred_check_branch
      %98 = sbr.rel (0) target = $region37
    $region36: #{tpu_custom_call.1} parent=1 // pred_region
      %100 = dma.done [#allocation6], 25088
    $region37: #{tpu_custom_call.1} parent=1 // pred_fallthru
      _
    // Predicated region
    $region38: #{tpu_custom_call.1} parent=1 // pred_check
      _
    $region39: #{tpu_custom_call.1} parent=1 // pred_check_branch
      %102 = sbr.rel (0) target = $region41
    $region40: #{tpu_custom_call.1} parent=1 // pred_region
      %104 = dma.done [#allocation6], 64
    $region41: #{tpu_custom_call.1} parent=1 // pred_fallthru
      _
    // Predicated region
    $region42: #{tpu_custom_call.1} parent=1 // pred_check
      _
    $region43: #{tpu_custom_call.1} parent=1 // pred_check_branch
      %106 = sbr.rel (0) target = $region45
    $region44: #{tpu_custom_call.1} parent=1 // pred_region
      %108 = dma.done [#allocation9], 16384
    $region45: #{tpu_custom_call.1} parent=1 // pred_fallthru
      _
    // Predicated region
    $region46: #{tpu_custom_call.1} parent=1 // pred_check
      _
    $region47: #{tpu_custom_call.1} parent=1 // pred_check_branch
      %110 = sbr.rel (0) target = $region49
    $region48: #{tpu_custom_call.1} parent=1 // pred_region
      %112 = dma.done [#allocation9], 64
    $region49: #{tpu_custom_call.1} parent=1 // pred_fallthru
      _
    // Predicated region
    $region50: #{tpu_custom_call.1} parent=1 // pred_check
      _
    $region51: #{tpu_custom_call.1} parent=1 // pred_check_branch
      %114 = sbr.rel (0) target = $region53
    $region52: #{tpu_custom_call.1} parent=1 // pred_region
      %116 = dma.done [#allocation12], 4096
    $region53: #{tpu_custom_call.1} parent=1 // pred_fallthru
      _
    %v118 = vld [vmem:[#allocation2] sm:$0xff]
    %v119 = vld [vmem:[#allocation2 + $0x8] sm:$0x3f]
    %v120 = vld [vmem:[#allocation2 + $0xe] sm:$0xff]
    %v121 = vld [vmem:[#allocation2 + $0x16] sm:$0x3f]
    %v122 = vld [vmem:[#allocation2 + $0x1c] sm:$0xff]
    %v123 = vld [vmem:[#allocation2 + $0x24] sm:$0x3f]
    %v124 = vld [vmem:[#allocation2 + $0x2a] sm:$0xff]
    %v125 = vld [vmem:[#allocation2 + $0x32] sm:$0x3f]
    %v126 = vld [vmem:[#allocation2 + $0x38] sm:$0xff]
    %v127 = vld [vmem:[#allocation2 + $0x40] sm:$0x3f]
    %v128 = vld [vmem:[#allocation2 + $0x46] sm:$0xff]
    %v129 = vld [vmem:[#allocation2 + $0x4e] sm:$0x3f]
    %v130 = vld [vmem:[#allocation2 + $0x54] sm:$0xff]
    %v131 = vld [vmem:[#allocation2 + $0x5c] sm:$0x3f]
    %v132 = vld [vmem:[#allocation2 + $0x62] sm:$0xff]
    %v133 = vld [vmem:[#allocation2 + $0x6a] sm:$0x3f]
    %150 = vst [vmem:[#allocation1] ss:$4 sm:$0xff] %v118
    %s151 = scalar_lea.vmem [#allocation1], 1
    %152 = vst [vmem:[%s151] ss:$4 sm:$0xff] %v120
    %s153 = scalar_lea.vmem [#allocation1], 2
    %154 = vst [vmem:[%s153] ss:$4 sm:$0xff] %v122
    %s155 = scalar_lea.vmem [#allocation1], 3
    %156 = vst [vmem:[%s155] ss:$4 sm:$0xff] %v124
    %s157 = scalar_lea.vmem [#allocation1], 32
    %158 = vst [vmem:[%s157] ss:$4 sm:$0xff] %v119
    %s159 = scalar_lea.vmem [#allocation1], 33
    %160 = vst [vmem:[%s159] ss:$4 sm:$0xff] %v121
    %s161 = scalar_lea.vmem [#allocation1], 34
    %162 = vst [vmem:[%s161] ss:$4 sm:$0xff] %v123
    %s163 = scalar_lea.vmem [#allocation1], 35
    %164 = vst [vmem:[%s163] ss:$4 sm:$0xff] %v125
    %v165 = vld.sshfl [vmem:[#allocation1] sm:$0xff pattern:$0x73625140]
    %v166 = vld.sshfl [vmem:[#allocation1 + $0x8] sm:$0xff pattern:$0x73625140]
    %v167 = vld.sshfl [vmem:[#allocation1 + $0x10] sm:$0xff pattern:$0x73625140]
    %v168 = vld.sshfl [vmem:[#allocation1 + $0x18] sm:$0xff pattern:$0x73625140]
    %v169 = vld.sshfl [vmem:[#allocation1 + $0x20] sm:$0xff pattern:$0x73625140]
    %v170 = vld.sshfl [vmem:[#allocation1 + $0x28] sm:$0xff pattern:$0x73625140]
    %v171 = vld.sshfl [vmem:[#allocation1 + $0x30] sm:$0xff pattern:$0x73625140]
    %172 = vst [vmem:[#allocation1] ss:$4 sm:$0xff] %v126
    %173 = vst [vmem:[%s151] ss:$4 sm:$0xff] %v128
    %174 = vst [vmem:[%s153] ss:$4 sm:$0xff] %v130
    %175 = vst [vmem:[%s155] ss:$4 sm:$0xff] %v132
    %176 = vst [vmem:[%s157] ss:$4 sm:$0xff] %v127
    %177 = vst [vmem:[%s159] ss:$4 sm:$0xff] %v129
    %178 = vst [vmem:[%s161] ss:$4 sm:$0xff] %v131
    %179 = vst [vmem:[%s163] ss:$4 sm:$0xff] %v133
    %v180 = vld.sshfl [vmem:[#allocation1] sm:$0xff pattern:$0x73625140]
    %v181 = vld.sshfl [vmem:[#allocation1 + $0x8] sm:$0xff pattern:$0x73625140]
    %v182 = vld.sshfl [vmem:[#allocation1 + $0x10] sm:$0xff pattern:$0x73625140]
    %v183 = vld.sshfl [vmem:[#allocation1 + $0x18] sm:$0xff pattern:$0x73625140]
    %v184 = vld.sshfl [vmem:[#allocation1 + $0x20] sm:$0xff pattern:$0x73625140]
    %v185 = vld.sshfl [vmem:[#allocation1 + $0x28] sm:$0xff pattern:$0x73625140]
    %v186 = vld.sshfl [vmem:[#allocation1 + $0x30] sm:$0xff pattern:$0x73625140]
    %v201 = vpack.c.bf16 %v180, %v165
    %v202 = vpack.c.bf16 %v181, %v166
    %v203 = vpack.c.bf16 %v182, %v167
    %v204 = vpack.c.bf16 %v183, %v168
    %v205 = vpack.c.bf16 %v184, %v169
    %v206 = vpack.c.bf16 %v185, %v170
    %v207 = vpack.c.bf16 %v186, %v171
    %v208 = vld [vmem:[#allocation5] sm:$0xff]
    %v209 = vld [vmem:[#allocation5 + $0x8] sm:$0xff]
    %v210 = vld [vmem:[#allocation5 + $0x10] sm:$0xff]
    %v211 = vld [vmem:[#allocation5 + $0x18] sm:$0xff]
    %v212 = vld [vmem:[#allocation5 + $0x20] sm:$0xff]
    %v213 = vld [vmem:[#allocation5 + $0x28] sm:$0xff]
    %v214 = vld [vmem:[#allocation5 + $0x30] sm:$0xff]
    %v215 = vld [vmem:[#allocation5 + $0x38] sm:$0xff]
    %v216 = vld [vmem:[#allocation5 + $0x40] sm:$0xff]
    %v217 = vld [vmem:[#allocation5 + $0x48] sm:$0xff]
    %v218 = vld [vmem:[#allocation5 + $0x50] sm:$0xff]
    %v219 = vld [vmem:[#allocation5 + $0x58] sm:$0xff]
    %v220 = vld [vmem:[#allocation5 + $0x60] sm:$0xff]
    %v221 = vld [vmem:[#allocation5 + $0x68] sm:$0xff]
    %v222 = vld [vmem:[#allocation5 + $0x70] sm:$0xff]
    %v223 = vld [vmem:[#allocation5 + $0x78] sm:$0xff]
    %v224 = vld [vmem:[#allocation5 + $0x80] sm:$0xff]
    %v225 = vld [vmem:[#allocation5 + $0x88] sm:$0xff]
    %v226 = vld [vmem:[#allocation5 + $0x90] sm:$0xff]
    %v227 = vld [vmem:[#allocation5 + $0x98] sm:$0xff]
    %v228 = vld [vmem:[#allocation5 + $0xa0] sm:$0xff]
    %v229 = vld [vmem:[#allocation5 + $0xa8] sm:$0xff]
    %v230 = vld [vmem:[#allocation5 + $0xb0] sm:$0xff]
    %v231 = vld [vmem:[#allocation5 + $0xb8] sm:$0xff]
    %v232 = vld [vmem:[#allocation5 + $0xc0] sm:$0xff]
    %v233 = vld [vmem:[#allocation5 + $0xc8] sm:$0xff]
    %v234 = vld [vmem:[#allocation5 + $0xd0] sm:$0xff]
    %v235 = vld [vmem:[#allocation5 + $0xd8] sm:$0xff]
    %v236 = vld [vmem:[#allocation5 + $0xe0] sm:$0xff]
    %v237 = vld [vmem:[#allocation5 + $0xe8] sm:$0xff]
    %v238 = vld [vmem:[#allocation5 + $0xf0] sm:$0xff]
    %v239 = vld [vmem:[#allocation5 + $0xf8] sm:$0xff]
    %v240 = vld [vmem:[#allocation5 + $0x100] sm:$0xff]
    %v241 = vld [vmem:[#allocation5 + $0x108] sm:$0xff]
    %v242 = vld [vmem:[#allocation5 + $0x110] sm:$0xff]
    %v243 = vld [vmem:[#allocation5 + $0x118] sm:$0xff]
    %v244 = vld [vmem:[#allocation5 + $0x120] sm:$0xff]
    %v245 = vld [vmem:[#allocation5 + $0x128] sm:$0xff]
    %v246 = vld [vmem:[#allocation5 + $0x130] sm:$0xff]
    %v247 = vld [vmem:[#allocation5 + $0x138] sm:$0xff]
    %v248 = vld [vmem:[#allocation5 + $0x140] sm:$0xff]
    %v249 = vld [vmem:[#allocation5 + $0x148] sm:$0xff]
    %v250 = vld [vmem:[#allocation5 + $0x150] sm:$0xff]
    %v251 = vld [vmem:[#allocation5 + $0x158] sm:$0xff]
    %v252 = vld [vmem:[#allocation5 + $0x160] sm:$0xff]
    %v253 = vld [vmem:[#allocation5 + $0x168] sm:$0xff]
    %v254 = vld [vmem:[#allocation5 + $0x170] sm:$0xff]
    %v255 = vld [vmem:[#allocation5 + $0x178] sm:$0xff]
    %v256 = vld [vmem:[#allocation5 + $0x180] sm:$0xff]
    %v257 = vld [vmem:[#allocation5 + $0x188] sm:$0xff]
    %v258 = vld [vmem:[#allocation5 + $0x190] sm:$0xff]
    %v259 = vld [vmem:[#allocation5 + $0x198] sm:$0xff]
    %v260 = vld [vmem:[#allocation5 + $0x1a0] sm:$0xff]
    %v261 = vld [vmem:[#allocation5 + $0x1a8] sm:$0xff]
    %v262 = vld [vmem:[#allocation5 + $0x1b0] sm:$0xff]
    %v263 = vld [vmem:[#allocation5 + $0x1b8] sm:$0xff]
    %v264 = vld [vmem:[#allocation5 + $0x1c0] sm:$0xff]
    %v265 = vld [vmem:[#allocation5 + $0x1c8] sm:$0xff]
    %v266 = vld [vmem:[#allocation5 + $0x1d0] sm:$0xff]
    %v267 = vld [vmem:[#allocation5 + $0x1d8] sm:$0xff]
    %v268 = vld [vmem:[#allocation5 + $0x1e0] sm:$0xff]
    %v269 = vld [vmem:[#allocation5 + $0x1e8] sm:$0xff]
    %v270 = vld [vmem:[#allocation5 + $0x1f0] sm:$0xff]
    %v271 = vld [vmem:[#allocation5 + $0x1f8] sm:$0xff]
    %v272 = vld [vmem:[#allocation5 + $0x200] sm:$0xff]
    %v273 = vld [vmem:[#allocation5 + $0x208] sm:$0xff]
    %v274 = vld [vmem:[#allocation5 + $0x210] sm:$0xff]
    %v275 = vld [vmem:[#allocation5 + $0x218] sm:$0xff]
    %v276 = vld [vmem:[#allocation5 + $0x220] sm:$0xff]
    %v277 = vld [vmem:[#allocation5 + $0x228] sm:$0xff]
    %v278 = vld [vmem:[#allocation5 + $0x230] sm:$0xff]
    %v279 = vld [vmem:[#allocation5 + $0x238] sm:$0xff]
    %v280 = vld [vmem:[#allocation5 + $0x240] sm:$0xff]
    %v281 = vld [vmem:[#allocation5 + $0x248] sm:$0xff]
    %v282 = vld [vmem:[#allocation5 + $0x250] sm:$0xff]
    %v283 = vld [vmem:[#allocation5 + $0x258] sm:$0xff]
    %v284 = vld [vmem:[#allocation5 + $0x260] sm:$0xff]
    %v285 = vld [vmem:[#allocation5 + $0x268] sm:$0xff]
    %v286 = vld [vmem:[#allocation5 + $0x270] sm:$0xff]
    %v287 = vld [vmem:[#allocation5 + $0x278] sm:$0xff]
    %v288 = vld [vmem:[#allocation5 + $0x280] sm:$0xff]
    %v289 = vld [vmem:[#allocation5 + $0x288] sm:$0xff]
    %v290 = vld [vmem:[#allocation5 + $0x290] sm:$0xff]
    %v291 = vld [vmem:[#allocation5 + $0x298] sm:$0xff]
    %v292 = vld [vmem:[#allocation5 + $0x2a0] sm:$0xff]
    %v293 = vld [vmem:[#allocation5 + $0x2a8] sm:$0xff]
    %v294 = vld [vmem:[#allocation5 + $0x2b0] sm:$0xff]
    %v295 = vld [vmem:[#allocation5 + $0x2b8] sm:$0xff]
    %v296 = vld [vmem:[#allocation5 + $0x2c0] sm:$0xff]
    %v297 = vld [vmem:[#allocation5 + $0x2c8] sm:$0xff]
    %v298 = vld [vmem:[#allocation5 + $0x2d0] sm:$0xff]
    %v299 = vld [vmem:[#allocation5 + $0x2d8] sm:$0xff]
    %v300 = vld [vmem:[#allocation5 + $0x2e0] sm:$0xff]
    %v301 = vld [vmem:[#allocation5 + $0x2e8] sm:$0xff]
    %v302 = vld [vmem:[#allocation5 + $0x2f0] sm:$0xff]
    %v303 = vld [vmem:[#allocation5 + $0x2f8] sm:$0xff]
    %v304 = vld [vmem:[#allocation5 + $0x300] sm:$0xff]
    %v305 = vld [vmem:[#allocation5 + $0x308] sm:$0xff]
    %v306 = vld [vmem:[#allocation5 + $0x310] sm:$0xff]
    %v307 = vld [vmem:[#allocation5 + $0x318] sm:$0xff]
    %v308 = vld [vmem:[#allocation5 + $0x320] sm:$0xff]
    %v309 = vld [vmem:[#allocation5 + $0x328] sm:$0xff]
    %v310 = vld [vmem:[#allocation5 + $0x330] sm:$0xff]
    %v311 = vld [vmem:[#allocation5 + $0x338] sm:$0xff]
    %v312 = vld [vmem:[#allocation5 + $0x340] sm:$0xff]
    %v313 = vld [vmem:[#allocation5 + $0x348] sm:$0xff]
    %v314 = vld [vmem:[#allocation5 + $0x350] sm:$0xff]
    %v315 = vld [vmem:[#allocation5 + $0x358] sm:$0xff]
    %v316 = vld [vmem:[#allocation5 + $0x360] sm:$0xff]
    %v317 = vld [vmem:[#allocation5 + $0x368] sm:$0xff]
    %v318 = vld [vmem:[#allocation5 + $0x370] sm:$0xff]
    %v319 = vld [vmem:[#allocation5 + $0x378] sm:$0xff]
    %v320 = vld [vmem:[#allocation5 + $0x380] sm:$0xff]
    %v321 = vld [vmem:[#allocation5 + $0x388] sm:$0xff]
    %v322 = vld [vmem:[#allocation5 + $0x390] sm:$0xff]
    %v323 = vld [vmem:[#allocation5 + $0x398] sm:$0xff]
    %v324 = vld [vmem:[#allocation5 + $0x3a0] sm:$0xff]
    %v325 = vld [vmem:[#allocation5 + $0x3a8] sm:$0xff]
    %v326 = vld [vmem:[#allocation5 + $0x3b0] sm:$0xff]
    %v327 = vld [vmem:[#allocation5 + $0x3b8] sm:$0xff]
    %v328 = vld [vmem:[#allocation5 + $0x3c0] sm:$0xff]
    %v329 = vld [vmem:[#allocation5 + $0x3c8] sm:$0xff]
    %v330 = vld [vmem:[#allocation5 + $0x3d0] sm:$0xff]
    %v331 = vld [vmem:[#allocation5 + $0x3d8] sm:$0xff]
    %v332 = vld [vmem:[#allocation5 + $0x3e0] sm:$0xff]
    %v333 = vld [vmem:[#allocation5 + $0x3e8] sm:$0xff]
    %v334 = vld [vmem:[#allocation5 + $0x3f0] sm:$0xff]
    %v335 = vld [vmem:[#allocation5 + $0x3f8] sm:$0xff]
    %v336 = vld [vmem:[#allocation5 + $0x400] sm:$0xff]
    %v337 = vld [vmem:[#allocation5 + $0x408] sm:$0xff]
    %v338 = vld [vmem:[#allocation5 + $0x410] sm:$0xff]
    %v339 = vld [vmem:[#allocation5 + $0x418] sm:$0xff]
    %v340 = vld [vmem:[#allocation5 + $0x420] sm:$0xff]
    %v341 = vld [vmem:[#allocation5 + $0x428] sm:$0xff]
    %v342 = vld [vmem:[#allocation5 + $0x430] sm:$0xff]
    %v343 = vld [vmem:[#allocation5 + $0x438] sm:$0xff]
    %v344 = vld [vmem:[#allocation5 + $0x440] sm:$0xff]
    %v345 = vld [vmem:[#allocation5 + $0x448] sm:$0xff]
    %v346 = vld [vmem:[#allocation5 + $0x450] sm:$0xff]
    %v347 = vld [vmem:[#allocation5 + $0x458] sm:$0xff]
    %v348 = vld [vmem:[#allocation5 + $0x460] sm:$0xff]
    %v349 = vld [vmem:[#allocation5 + $0x468] sm:$0xff]
    %v350 = vld [vmem:[#allocation5 + $0x470] sm:$0xff]
    %v351 = vld [vmem:[#allocation5 + $0x478] sm:$0xff]
    %v352 = vld [vmem:[#allocation5 + $0x480] sm:$0xff]
    %v353 = vld [vmem:[#allocation5 + $0x488] sm:$0xff]
    %v354 = vld [vmem:[#allocation5 + $0x490] sm:$0xff]
    %v355 = vld [vmem:[#allocation5 + $0x498] sm:$0xff]
    %v356 = vld [vmem:[#allocation5 + $0x4a0] sm:$0xff]
    %v357 = vld [vmem:[#allocation5 + $0x4a8] sm:$0xff]
    %v358 = vld [vmem:[#allocation5 + $0x4b0] sm:$0xff]
    %v359 = vld [vmem:[#allocation5 + $0x4b8] sm:$0xff]
    %v360 = vld [vmem:[#allocation5 + $0x4c0] sm:$0xff]
    %v361 = vld [vmem:[#allocation5 + $0x4c8] sm:$0xff]
    %v362 = vld [vmem:[#allocation5 + $0x4d0] sm:$0xff]
    %v363 = vld [vmem:[#allocation5 + $0x4d8] sm:$0xff]
    %v364 = vld [vmem:[#allocation5 + $0x4e0] sm:$0xff]
    %v365 = vld [vmem:[#allocation5 + $0x4e8] sm:$0xff]
    %v366 = vld [vmem:[#allocation5 + $0x4f0] sm:$0xff]
    %v367 = vld [vmem:[#allocation5 + $0x4f8] sm:$0xff]
    %v368 = vld [vmem:[#allocation5 + $0x500] sm:$0xff]
    %v369 = vld [vmem:[#allocation5 + $0x508] sm:$0xff]
    %v370 = vld [vmem:[#allocation5 + $0x510] sm:$0xff]
    %v371 = vld [vmem:[#allocation5 + $0x518] sm:$0xff]
    %v372 = vld [vmem:[#allocation5 + $0x520] sm:$0xff]
    %v373 = vld [vmem:[#allocation5 + $0x528] sm:$0xff]
    %v374 = vld [vmem:[#allocation5 + $0x530] sm:$0xff]
    %v375 = vld [vmem:[#allocation5 + $0x538] sm:$0xff]
    %v376 = vld [vmem:[#allocation5 + $0x540] sm:$0xff]
    %v377 = vld [vmem:[#allocation5 + $0x548] sm:$0xff]
    %v378 = vld [vmem:[#allocation5 + $0x550] sm:$0xff]
    %v379 = vld [vmem:[#allocation5 + $0x558] sm:$0xff]
    %v380 = vld [vmem:[#allocation5 + $0x560] sm:$0xff]
    %v381 = vld [vmem:[#allocation5 + $0x568] sm:$0xff]
    %v382 = vld [vmem:[#allocation5 + $0x570] sm:$0xff]
    %v383 = vld [vmem:[#allocation5 + $0x578] sm:$0xff]
    %v384 = vld [vmem:[#allocation5 + $0x580] sm:$0xff]
    %v385 = vld [vmem:[#allocation5 + $0x588] sm:$0xff]
    %v386 = vld [vmem:[#allocation5 + $0x590] sm:$0xff]
    %v387 = vld [vmem:[#allocation5 + $0x598] sm:$0xff]
    %v388 = vld [vmem:[#allocation5 + $0x5a0] sm:$0xff]
    %v389 = vld [vmem:[#allocation5 + $0x5a8] sm:$0xff]
    %v390 = vld [vmem:[#allocation5 + $0x5b0] sm:$0xff]
    %v391 = vld [vmem:[#allocation5 + $0x5b8] sm:$0xff]
    %v392 = vld [vmem:[#allocation5 + $0x5c0] sm:$0xff]
    %v393 = vld [vmem:[#allocation5 + $0x5c8] sm:$0xff]
    %v394 = vld [vmem:[#allocation5 + $0x5d0] sm:$0xff]
    %v395 = vld [vmem:[#allocation5 + $0x5d8] sm:$0xff]
    %v396 = vld [vmem:[#allocation5 + $0x5e0] sm:$0xff]
    %v397 = vld [vmem:[#allocation5 + $0x5e8] sm:$0xff]
    %v398 = vld [vmem:[#allocation5 + $0x5f0] sm:$0xff]
    %v399 = vld [vmem:[#allocation5 + $0x5f8] sm:$0xff]
    %v400 = vld [vmem:[#allocation5 + $0x600] sm:$0xff]
    %v401 = vld [vmem:[#allocation5 + $0x608] sm:$0xff]
    %v402 = vld [vmem:[#allocation5 + $0x610] sm:$0xff]
    %v403 = vld [vmem:[#allocation5 + $0x618] sm:$0xff]
    %v404 = vld [vmem:[#allocation7] sm:$0xf]
    %v406 = vperm.slane %v404, 0
    %v407 = vperm.slane %v404, 1
    %v408 = vperm.slane %v404, 2
    %v409 = vperm.slane %v404, 3
    %v610 = vunpack.c.l.b16 %v208
    %v611 = vunpack.c.h.b16 %v208
    %v612 = vunpack.c.l.b16 %v209
    %v613 = vunpack.c.h.b16 %v209
    %v614 = vunpack.c.l.b16 %v210
    %v615 = vunpack.c.h.b16 %v210
    %v616 = vunpack.c.l.b16 %v211
    %v617 = vunpack.c.h.b16 %v211
    %v618 = vunpack.c.l.b16 %v212
    %v619 = vunpack.c.h.b16 %v212
    %v620 = vunpack.c.l.b16 %v213
    %v621 = vunpack.c.h.b16 %v213
    %v622 = vunpack.c.l.b16 %v214
    %v623 = vunpack.c.h.b16 %v214
    %v624 = vunpack.c.l.b16 %v215
    %v625 = vunpack.c.h.b16 %v215
    %v626 = vunpack.c.l.b16 %v216
    %v627 = vunpack.c.h.b16 %v216
    %v628 = vunpack.c.l.b16 %v217
    %v629 = vunpack.c.h.b16 %v217
    %v630 = vunpack.c.l.b16 %v218
    %v631 = vunpack.c.h.b16 %v218
    %v632 = vunpack.c.l.b16 %v219
    %v633 = vunpack.c.h.b16 %v219
    %v634 = vunpack.c.l.b16 %v220
    %v635 = vunpack.c.h.b16 %v220
    %v636 = vunpack.c.l.b16 %v221
    %v637 = vunpack.c.h.b16 %v221
    %v638 = vunpack.c.l.b16 %v222
    %v639 = vunpack.c.h.b16 %v222
    %v640 = vunpack.c.l.b16 %v223
    %v641 = vunpack.c.h.b16 %v223
    %v642 = vunpack.c.l.b16 %v224
    %v643 = vunpack.c.h.b16 %v224
    %v644 = vunpack.c.l.b16 %v225
    %v645 = vunpack.c.h.b16 %v225
    %v646 = vunpack.c.l.b16 %v226
    %v647 = vunpack.c.h.b16 %v226
    %v648 = vunpack.c.l.b16 %v227
    %v649 = vunpack.c.h.b16 %v227
    %v650 = vunpack.c.l.b16 %v228
    %v651 = vunpack.c.h.b16 %v228
    %v652 = vunpack.c.l.b16 %v229
    %v653 = vunpack.c.h.b16 %v229
    %v654 = vunpack.c.l.b16 %v230
    %v655 = vunpack.c.h.b16 %v230
    %v656 = vunpack.c.l.b16 %v231
    %v657 = vunpack.c.h.b16 %v231
    %v658 = vunpack.c.l.b16 %v232
    %v659 = vunpack.c.h.b16 %v232
    %v660 = vunpack.c.l.b16 %v233
    %v661 = vunpack.c.h.b16 %v233
    %v662 = vunpack.c.l.b16 %v234
    %v663 = vunpack.c.h.b16 %v234
    %v664 = vunpack.c.l.b16 %v235
    %v665 = vunpack.c.h.b16 %v235
    %v666 = vunpack.c.l.b16 %v236
    %v667 = vunpack.c.h.b16 %v236
    %v668 = vunpack.c.l.b16 %v237
    %v669 = vunpack.c.h.b16 %v237
    %v670 = vunpack.c.l.b16 %v238
    %v671 = vunpack.c.h.b16 %v238
    %v672 = vunpack.c.l.b16 %v239
    %v673 = vunpack.c.h.b16 %v239
    %v674 = vunpack.c.l.b16 %v240
    %v675 = vunpack.c.h.b16 %v240
    %v676 = vunpack.c.l.b16 %v241
    %v677 = vunpack.c.h.b16 %v241
    %v678 = vunpack.c.l.b16 %v242
    %v679 = vunpack.c.h.b16 %v242
    %v680 = vunpack.c.l.b16 %v243
    %v681 = vunpack.c.h.b16 %v243
    %v682 = vunpack.c.l.b16 %v244
    %v683 = vunpack.c.h.b16 %v244
    %v684 = vunpack.c.l.b16 %v245
    %v685 = vunpack.c.h.b16 %v245
    %v686 = vunpack.c.l.b16 %v246
    %v687 = vunpack.c.h.b16 %v246
    %v688 = vunpack.c.l.b16 %v247
    %v689 = vunpack.c.h.b16 %v247
    %v690 = vunpack.c.l.b16 %v248
    %v691 = vunpack.c.h.b16 %v248
    %v692 = vunpack.c.l.b16 %v249
    %v693 = vunpack.c.h.b16 %v249
    %v694 = vunpack.c.l.b16 %v250
    %v695 = vunpack.c.h.b16 %v250
    %v696 = vunpack.c.l.b16 %v251
    %v697 = vunpack.c.h.b16 %v251
    %v698 = vunpack.c.l.b16 %v252
    %v699 = vunpack.c.h.b16 %v252
    %v700 = vunpack.c.l.b16 %v253
    %v701 = vunpack.c.h.b16 %v253
    %v702 = vunpack.c.l.b16 %v254
    %v703 = vunpack.c.h.b16 %v254
    %v704 = vunpack.c.l.b16 %v255
    %v705 = vunpack.c.h.b16 %v255
    %v706 = vunpack.c.l.b16 %v256
    %v707 = vunpack.c.h.b16 %v256
    %v708 = vunpack.c.l.b16 %v257
    %v709 = vunpack.c.h.b16 %v257
    %v710 = vunpack.c.l.b16 %v258
    %v711 = vunpack.c.h.b16 %v258
    %v712 = vunpack.c.l.b16 %v259
    %v713 = vunpack.c.h.b16 %v259
    %v714 = vunpack.c.l.b16 %v260
    %v715 = vunpack.c.h.b16 %v260
    %v716 = vunpack.c.l.b16 %v261
    %v717 = vunpack.c.h.b16 %v261
    %v718 = vunpack.c.l.b16 %v262
    %v719 = vunpack.c.h.b16 %v262
    %v720 = vunpack.c.l.b16 %v263
    %v721 = vunpack.c.h.b16 %v263
    %v722 = vunpack.c.l.b16 %v264
    %v723 = vunpack.c.h.b16 %v264
    %v724 = vunpack.c.l.b16 %v265
    %v725 = vunpack.c.h.b16 %v265
    %v726 = vunpack.c.l.b16 %v266
    %v727 = vunpack.c.h.b16 %v266
    %v728 = vunpack.c.l.b16 %v267
    %v729 = vunpack.c.h.b16 %v267
    %v730 = vunpack.c.l.b16 %v268
    %v731 = vunpack.c.h.b16 %v268
    %v732 = vunpack.c.l.b16 %v269
    %v733 = vunpack.c.h.b16 %v269
    %v734 = vunpack.c.l.b16 %v270
    %v735 = vunpack.c.h.b16 %v270
    %v736 = vunpack.c.l.b16 %v271
    %v737 = vunpack.c.h.b16 %v271
    %v738 = vunpack.c.l.b16 %v272
    %v739 = vunpack.c.h.b16 %v272
    %v740 = vunpack.c.l.b16 %v273
    %v741 = vunpack.c.h.b16 %v273
    %v742 = vunpack.c.l.b16 %v274
    %v743 = vunpack.c.h.b16 %v274
    %v744 = vunpack.c.l.b16 %v275
    %v745 = vunpack.c.h.b16 %v275
    %v746 = vunpack.c.l.b16 %v276
    %v747 = vunpack.c.h.b16 %v276
    %v748 = vunpack.c.l.b16 %v277
    %v749 = vunpack.c.h.b16 %v277
    %v750 = vunpack.c.l.b16 %v278
    %v751 = vunpack.c.h.b16 %v278
    %v752 = vunpack.c.l.b16 %v279
    %v753 = vunpack.c.h.b16 %v279
    %v754 = vunpack.c.l.b16 %v280
    %v755 = vunpack.c.h.b16 %v280
    %v756 = vunpack.c.l.b16 %v281
    %v757 = vunpack.c.h.b16 %v281
    %v758 = vunpack.c.l.b16 %v282
    %v759 = vunpack.c.h.b16 %v282
    %v760 = vunpack.c.l.b16 %v283
    %v761 = vunpack.c.h.b16 %v283
    %v762 = vunpack.c.l.b16 %v284
    %v763 = vunpack.c.h.b16 %v284
    %v764 = vunpack.c.l.b16 %v285
    %v765 = vunpack.c.h.b16 %v285
    %v766 = vunpack.c.l.b16 %v286
    %v767 = vunpack.c.h.b16 %v286
    %v768 = vunpack.c.l.b16 %v287
    %v769 = vunpack.c.h.b16 %v287
    %v770 = vunpack.c.l.b16 %v288
    %v771 = vunpack.c.h.b16 %v288
    %v772 = vunpack.c.l.b16 %v289
    %v773 = vunpack.c.h.b16 %v289
    %v774 = vunpack.c.l.b16 %v290
    %v775 = vunpack.c.h.b16 %v290
    %v776 = vunpack.c.l.b16 %v291
    %v777 = vunpack.c.h.b16 %v291
    %v778 = vunpack.c.l.b16 %v292
    %v779 = vunpack.c.h.b16 %v292
    %v780 = vunpack.c.l.b16 %v293
    %v781 = vunpack.c.h.b16 %v293
    %v782 = vunpack.c.l.b16 %v294
    %v783 = vunpack.c.h.b16 %v294
    %v784 = vunpack.c.l.b16 %v295
    %v785 = vunpack.c.h.b16 %v295
    %v786 = vunpack.c.l.b16 %v296
    %v787 = vunpack.c.h.b16 %v296
    %v788 = vunpack.c.l.b16 %v297
    %v789 = vunpack.c.h.b16 %v297
    %v790 = vunpack.c.l.b16 %v298
    %v791 = vunpack.c.h.b16 %v298
    %v792 = vunpack.c.l.b16 %v299
    %v793 = vunpack.c.h.b16 %v299
    %v794 = vunpack.c.l.b16 %v300
    %v795 = vunpack.c.h.b16 %v300
    %v796 = vunpack.c.l.b16 %v301
    %v797 = vunpack.c.h.b16 %v301
    %v798 = vunpack.c.l.b16 %v302
    %v799 = vunpack.c.h.b16 %v302
    %v800 = vunpack.c.l.b16 %v303
    %v801 = vunpack.c.h.b16 %v303
    %v802 = vunpack.c.l.b16 %v304
    %v803 = vunpack.c.h.b16 %v304
    %v804 = vunpack.c.l.b16 %v305
    %v805 = vunpack.c.h.b16 %v305
    %v806 = vunpack.c.l.b16 %v306
    %v807 = vunpack.c.h.b16 %v306
    %v808 = vunpack.c.l.b16 %v307
    %v809 = vunpack.c.h.b16 %v307
    %v810 = vunpack.c.l.b16 %v308
    %v811 = vunpack.c.h.b16 %v308
    %v812 = vunpack.c.l.b16 %v309
    %v813 = vunpack.c.h.b16 %v309
    %v814 = vunpack.c.l.b16 %v310
    %v815 = vunpack.c.h.b16 %v310
    %v816 = vunpack.c.l.b16 %v311
    %v817 = vunpack.c.h.b16 %v311
    %v818 = vunpack.c.l.b16 %v312
    %v819 = vunpack.c.h.b16 %v312
    %v820 = vunpack.c.l.b16 %v313
    %v821 = vunpack.c.h.b16 %v313
    %v822 = vunpack.c.l.b16 %v314
    %v823 = vunpack.c.h.b16 %v314
    %v824 = vunpack.c.l.b16 %v315
    %v825 = vunpack.c.h.b16 %v315
    %v826 = vunpack.c.l.b16 %v316
    %v827 = vunpack.c.h.b16 %v316
    %v828 = vunpack.c.l.b16 %v317
    %v829 = vunpack.c.h.b16 %v317
    %v830 = vunpack.c.l.b16 %v318
    %v831 = vunpack.c.h.b16 %v318
    %v832 = vunpack.c.l.b16 %v319
    %v833 = vunpack.c.h.b16 %v319
    %v834 = vunpack.c.l.b16 %v320
    %v835 = vunpack.c.h.b16 %v320
    %v836 = vunpack.c.l.b16 %v321
    %v837 = vunpack.c.h.b16 %v321
    %v838 = vunpack.c.l.b16 %v322
    %v839 = vunpack.c.h.b16 %v322
    %v840 = vunpack.c.l.b16 %v323
    %v841 = vunpack.c.h.b16 %v323
    %v842 = vunpack.c.l.b16 %v324
    %v843 = vunpack.c.h.b16 %v324
    %v844 = vunpack.c.l.b16 %v325
    %v845 = vunpack.c.h.b16 %v325
    %v846 = vunpack.c.l.b16 %v326
    %v847 = vunpack.c.h.b16 %v326
    %v848 = vunpack.c.l.b16 %v327
    %v849 = vunpack.c.h.b16 %v327
    %v850 = vunpack.c.l.b16 %v328
    %v851 = vunpack.c.h.b16 %v328
    %v852 = vunpack.c.l.b16 %v329
    %v853 = vunpack.c.h.b16 %v329
    %v854 = vunpack.c.l.b16 %v330
    %v855 = vunpack.c.h.b16 %v330
    %v856 = vunpack.c.l.b16 %v331
    %v857 = vunpack.c.h.b16 %v331
    %v858 = vunpack.c.l.b16 %v332
    %v859 = vunpack.c.h.b16 %v332
    %v860 = vunpack.c.l.b16 %v333
    %v861 = vunpack.c.h.b16 %v333
    %v862 = vunpack.c.l.b16 %v334
    %v863 = vunpack.c.h.b16 %v334
    %v864 = vunpack.c.l.b16 %v335
    %v865 = vunpack.c.h.b16 %v335
    %v866 = vunpack.c.l.b16 %v336
    %v867 = vunpack.c.h.b16 %v336
    %v868 = vunpack.c.l.b16 %v337
    %v869 = vunpack.c.h.b16 %v337
    %v870 = vunpack.c.l.b16 %v338
    %v871 = vunpack.c.h.b16 %v338
    %v872 = vunpack.c.l.b16 %v339
    %v873 = vunpack.c.h.b16 %v339
    %v874 = vunpack.c.l.b16 %v340
    %v875 = vunpack.c.h.b16 %v340
    %v876 = vunpack.c.l.b16 %v341
    %v877 = vunpack.c.h.b16 %v341
    %v878 = vunpack.c.l.b16 %v342
    %v879 = vunpack.c.h.b16 %v342
    %v880 = vunpack.c.l.b16 %v343
    %v881 = vunpack.c.h.b16 %v343
    %v882 = vunpack.c.l.b16 %v344
    %v883 = vunpack.c.h.b16 %v344
    %v884 = vunpack.c.l.b16 %v345
    %v885 = vunpack.c.h.b16 %v345
    %v886 = vunpack.c.l.b16 %v346
    %v887 = vunpack.c.h.b16 %v346
    %v888 = vunpack.c.l.b16 %v347
    %v889 = vunpack.c.h.b16 %v347
    %v890 = vunpack.c.l.b16 %v348
    %v891 = vunpack.c.h.b16 %v348
    %v892 = vunpack.c.l.b16 %v349
    %v893 = vunpack.c.h.b16 %v349
    %v894 = vunpack.c.l.b16 %v350
    %v895 = vunpack.c.h.b16 %v350
    %v896 = vunpack.c.l.b16 %v351
    %v897 = vunpack.c.h.b16 %v351
    %v898 = vunpack.c.l.b16 %v352
    %v899 = vunpack.c.h.b16 %v352
    %v900 = vunpack.c.l.b16 %v353
    %v901 = vunpack.c.h.b16 %v353
    %v902 = vunpack.c.l.b16 %v354
    %v903 = vunpack.c.h.b16 %v354
    %v904 = vunpack.c.l.b16 %v355
    %v905 = vunpack.c.h.b16 %v355
    %v906 = vunpack.c.l.b16 %v356
    %v907 = vunpack.c.h.b16 %v356
    %v908 = vunpack.c.l.b16 %v357
    %v909 = vunpack.c.h.b16 %v357
    %v910 = vunpack.c.l.b16 %v358
    %v911 = vunpack.c.h.b16 %v358
    %v912 = vunpack.c.l.b16 %v359
    %v913 = vunpack.c.h.b16 %v359
    %v914 = vunpack.c.l.b16 %v360
    %v915 = vunpack.c.h.b16 %v360
    %v916 = vunpack.c.l.b16 %v361
    %v917 = vunpack.c.h.b16 %v361
    %v918 = vunpack.c.l.b16 %v362
    %v919 = vunpack.c.h.b16 %v362
    %v920 = vunpack.c.l.b16 %v363
    %v921 = vunpack.c.h.b16 %v363
    %v922 = vunpack.c.l.b16 %v364
    %v923 = vunpack.c.h.b16 %v364
    %v924 = vunpack.c.l.b16 %v365
    %v925 = vunpack.c.h.b16 %v365
    %v926 = vunpack.c.l.b16 %v366
    %v927 = vunpack.c.h.b16 %v366
    %v928 = vunpack.c.l.b16 %v367
    %v929 = vunpack.c.h.b16 %v367
    %v930 = vunpack.c.l.b16 %v368
    %v931 = vunpack.c.h.b16 %v368
    %v932 = vunpack.c.l.b16 %v369
    %v933 = vunpack.c.h.b16 %v369
    %v934 = vunpack.c.l.b16 %v370
    %v935 = vunpack.c.h.b16 %v370
    %v936 = vunpack.c.l.b16 %v371
    %v937 = vunpack.c.h.b16 %v371
    %v938 = vunpack.c.l.b16 %v372
    %v939 = vunpack.c.h.b16 %v372
    %v940 = vunpack.c.l.b16 %v373
    %v941 = vunpack.c.h.b16 %v373
    %v942 = vunpack.c.l.b16 %v374
    %v943 = vunpack.c.h.b16 %v374
    %v944 = vunpack.c.l.b16 %v375
    %v945 = vunpack.c.h.b16 %v375
    %v946 = vunpack.c.l.b16 %v376
    %v947 = vunpack.c.h.b16 %v376
    %v948 = vunpack.c.l.b16 %v377
    %v949 = vunpack.c.h.b16 %v377
    %v950 = vunpack.c.l.b16 %v378
    %v951 = vunpack.c.h.b16 %v378
    %v952 = vunpack.c.l.b16 %v379
    %v953 = vunpack.c.h.b16 %v379
    %v954 = vunpack.c.l.b16 %v380
    %v955 = vunpack.c.h.b16 %v380
    %v956 = vunpack.c.l.b16 %v381
    %v957 = vunpack.c.h.b16 %v381
    %v958 = vunpack.c.l.b16 %v382
    %v959 = vunpack.c.h.b16 %v382
    %v960 = vunpack.c.l.b16 %v383
    %v961 = vunpack.c.h.b16 %v383
    %v962 = vunpack.c.l.b16 %v384
    %v963 = vunpack.c.h.b16 %v384
    %v964 = vunpack.c.l.b16 %v385
    %v965 = vunpack.c.h.b16 %v385
    %v966 = vunpack.c.l.b16 %v386
    %v967 = vunpack.c.h.b16 %v386
    %v968 = vunpack.c.l.b16 %v387
    %v969 = vunpack.c.h.b16 %v387
    %v970 = vunpack.c.l.b16 %v388
    %v971 = vunpack.c.h.b16 %v388
    %v972 = vunpack.c.l.b16 %v389
    %v973 = vunpack.c.h.b16 %v389
    %v974 = vunpack.c.l.b16 %v390
    %v975 = vunpack.c.h.b16 %v390
    %v976 = vunpack.c.l.b16 %v391
    %v977 = vunpack.c.h.b16 %v391
    %v978 = vunpack.c.l.b16 %v392
    %v979 = vunpack.c.h.b16 %v392
    %v980 = vunpack.c.l.b16 %v393
    %v981 = vunpack.c.h.b16 %v393
    %v982 = vunpack.c.l.b16 %v394
    %v983 = vunpack.c.h.b16 %v394
    %v984 = vunpack.c.l.b16 %v395
    %v985 = vunpack.c.h.b16 %v395
    %v986 = vunpack.c.l.b16 %v396
    %v987 = vunpack.c.h.b16 %v396
    %v988 = vunpack.c.l.b16 %v397
    %v989 = vunpack.c.h.b16 %v397
    %v990 = vunpack.c.l.b16 %v398
    %v991 = vunpack.c.h.b16 %v398
    %v992 = vunpack.c.l.b16 %v399
    %v993 = vunpack.c.h.b16 %v399
    %v994 = vunpack.c.l.b16 %v400
    %v995 = vunpack.c.h.b16 %v400
    %v996 = vunpack.c.l.b16 %v401
    %v997 = vunpack.c.h.b16 %v401
    %v998 = vunpack.c.l.b16 %v402
    %v999 = vunpack.c.h.b16 %v402
    %v1000 = vunpack.c.l.b16 %v403
    %v1001 = vunpack.c.h.b16 %v403
    %v1002 = vpack.c.b16 %v614, %v610
    %v1003 = vpack.c.b16 %v615, %v611
    %v1004 = vpack.c.b16 %v616, %v612
    %v1005 = vpack.c.b16 %v617, %v613
    %v1006 = vpack.c.b16 %v622, %v618
    %v1007 = vpack.c.b16 %v623, %v619
    %v1008 = vpack.c.b16 %v624, %v620
    %v1009 = vpack.c.b16 %v625, %v621
    %v1010 = vpack.c.b16 %v630, %v626
    %v1011 = vpack.c.b16 %v631, %v627
    %v1012 = vpack.c.b16 %v632, %v628
    %v1013 = vpack.c.b16 %v633, %v629
    %v1014 = vpack.c.b16 %v638, %v634
    %v1015 = vpack.c.b16 %v639, %v635
    %v1016 = vpack.c.b16 %v640, %v636
    %v1017 = vpack.c.b16 %v641, %v637
    %v1018 = vpack.c.b16 %v646, %v642
    %v1019 = vpack.c.b16 %v647, %v643
    %v1020 = vpack.c.b16 %v648, %v644
    %v1021 = vpack.c.b16 %v649, %v645
    %v1022 = vpack.c.b16 %v654, %v650
    %v1023 = vpack.c.b16 %v655, %v651
    %v1024 = vpack.c.b16 %v656, %v652
    %v1025 = vpack.c.b16 %v657, %v653
    %v1026 = vpack.c.b16 %v662, %v658
    %v1027 = vpack.c.b16 %v663, %v659
    %v1028 = vpack.c.b16 %v664, %v660
    %v1029 = vpack.c.b16 %v665, %v661
    %v1030 = vpack.c.b16 %v670, %v666
    %v1031 = vpack.c.b16 %v671, %v667
    %v1032 = vpack.c.b16 %v672, %v668
    %v1033 = vpack.c.b16 %v673, %v669
    %v1034 = vpack.c.b16 %v678, %v674
    %v1035 = vpack.c.b16 %v679, %v675
    %v1036 = vpack.c.b16 %v680, %v676
    %v1037 = vpack.c.b16 %v681, %v677
    %v1038 = vpack.c.b16 %v686, %v682
    %v1039 = vpack.c.b16 %v687, %v683
    %v1040 = vpack.c.b16 %v688, %v684
    %v1041 = vpack.c.b16 %v689, %v685
    %v1042 = vpack.c.b16 %v694, %v690
    %v1043 = vpack.c.b16 %v695, %v691
    %v1044 = vpack.c.b16 %v696, %v692
    %v1045 = vpack.c.b16 %v697, %v693
    %v1046 = vpack.c.b16 %v702, %v698
    %v1047 = vpack.c.b16 %v703, %v699
    %v1048 = vpack.c.b16 %v704, %v700
    %v1049 = vpack.c.b16 %v705, %v701
    %v1050 = vpack.c.b16 %v710, %v706
    %v1051 = vpack.c.b16 %v711, %v707
    %v1052 = vpack.c.b16 %v712, %v708
    %v1053 = vpack.c.b16 %v713, %v709
    %v1054 = vpack.c.b16 %v718, %v714
    %v1055 = vpack.c.b16 %v719, %v715
    %v1056 = vpack.c.b16 %v720, %v716
    %v1057 = vpack.c.b16 %v721, %v717
    %v1058 = vpack.c.b16 %v726, %v722
    %v1059 = vpack.c.b16 %v727, %v723
    %v1060 = vpack.c.b16 %v728, %v724
    %v1061 = vpack.c.b16 %v729, %v725
    %v1062 = vpack.c.b16 %v734, %v730
    %v1063 = vpack.c.b16 %v735, %v731
    %v1064 = vpack.c.b16 %v736, %v732
    %v1065 = vpack.c.b16 %v737, %v733
    %v1066 = vpack.c.b16 %v742, %v738
    %v1067 = vpack.c.b16 %v743, %v739
    %v1068 = vpack.c.b16 %v744, %v740
    %v1069 = vpack.c.b16 %v745, %v741
    %v1070 = vpack.c.b16 %v750, %v746
    %v1071 = vpack.c.b16 %v751, %v747
    %v1072 = vpack.c.b16 %v752, %v748
    %v1073 = vpack.c.b16 %v753, %v749
    %v1074 = vpack.c.b16 %v758, %v754
    %v1075 = vpack.c.b16 %v759, %v755
    %v1076 = vpack.c.b16 %v760, %v756
    %v1077 = vpack.c.b16 %v761, %v757
    %v1078 = vpack.c.b16 %v766, %v762
    %v1079 = vpack.c.b16 %v767, %v763
    %v1080 = vpack.c.b16 %v768, %v764
    %v1081 = vpack.c.b16 %v769, %v765
    %v1082 = vpack.c.b16 %v774, %v770
    %v1083 = vpack.c.b16 %v775, %v771
    %v1084 = vpack.c.b16 %v776, %v772
    %v1085 = vpack.c.b16 %v777, %v773
    %v1086 = vpack.c.b16 %v782, %v778
    %v1087 = vpack.c.b16 %v783, %v779
    %v1088 = vpack.c.b16 %v784, %v780
    %v1089 = vpack.c.b16 %v785, %v781
    %v1090 = vpack.c.b16 %v790, %v786
    %v1091 = vpack.c.b16 %v791, %v787
    %v1092 = vpack.c.b16 %v792, %v788
    %v1093 = vpack.c.b16 %v793, %v789
    %v1094 = vpack.c.b16 %v798, %v794
    %v1095 = vpack.c.b16 %v799, %v795
    %v1096 = vpack.c.b16 %v800, %v796
    %v1097 = vpack.c.b16 %v801, %v797
    %v1098 = vpack.c.b16 %v806, %v802
    %v1099 = vpack.c.b16 %v807, %v803
    %v1100 = vpack.c.b16 %v808, %v804
    %v1101 = vpack.c.b16 %v809, %v805
    %v1102 = vpack.c.b16 %v814, %v810
    %v1103 = vpack.c.b16 %v815, %v811
    %v1104 = vpack.c.b16 %v816, %v812
    %v1105 = vpack.c.b16 %v817, %v813
    %v1106 = vpack.c.b16 %v822, %v818
    %v1107 = vpack.c.b16 %v823, %v819
    %v1108 = vpack.c.b16 %v824, %v820
    %v1109 = vpack.c.b16 %v825, %v821
    %v1110 = vpack.c.b16 %v830, %v826
    %v1111 = vpack.c.b16 %v831, %v827
    %v1112 = vpack.c.b16 %v832, %v828
    %v1113 = vpack.c.b16 %v833, %v829
    %v1114 = vpack.c.b16 %v838, %v834
    %v1115 = vpack.c.b16 %v839, %v835
    %v1116 = vpack.c.b16 %v840, %v836
    %v1117 = vpack.c.b16 %v841, %v837
    %v1118 = vpack.c.b16 %v846, %v842
    %v1119 = vpack.c.b16 %v847, %v843
    %v1120 = vpack.c.b16 %v848, %v844
    %v1121 = vpack.c.b16 %v849, %v845
    %v1122 = vpack.c.b16 %v854, %v850
    %v1123 = vpack.c.b16 %v855, %v851
    %v1124 = vpack.c.b16 %v856, %v852
    %v1125 = vpack.c.b16 %v857, %v853
    %v1126 = vpack.c.b16 %v862, %v858
    %v1127 = vpack.c.b16 %v863, %v859
    %v1128 = vpack.c.b16 %v864, %v860
    %v1129 = vpack.c.b16 %v865, %v861
    %v1130 = vpack.c.b16 %v870, %v866
    %v1131 = vpack.c.b16 %v871, %v867
    %v1132 = vpack.c.b16 %v872, %v868
    %v1133 = vpack.c.b16 %v873, %v869
    %v1134 = vpack.c.b16 %v878, %v874
    %v1135 = vpack.c.b16 %v879, %v875
    %v1136 = vpack.c.b16 %v880, %v876
    %v1137 = vpack.c.b16 %v881, %v877
    %v1138 = vpack.c.b16 %v886, %v882
    %v1139 = vpack.c.b16 %v887, %v883
    %v1140 = vpack.c.b16 %v888, %v884
    %v1141 = vpack.c.b16 %v889, %v885
    %v1142 = vpack.c.b16 %v894, %v890
    %v1143 = vpack.c.b16 %v895, %v891
    %v1144 = vpack.c.b16 %v896, %v892
    %v1145 = vpack.c.b16 %v897, %v893
    %v1146 = vpack.c.b16 %v902, %v898
    %v1147 = vpack.c.b16 %v903, %v899
    %v1148 = vpack.c.b16 %v904, %v900
    %v1149 = vpack.c.b16 %v905, %v901
    %v1150 = vpack.c.b16 %v910, %v906
    %v1151 = vpack.c.b16 %v911, %v907
    %v1152 = vpack.c.b16 %v912, %v908
    %v1153 = vpack.c.b16 %v913, %v909
    %v1154 = vpack.c.b16 %v918, %v914
    %v1155 = vpack.c.b16 %v919, %v915
    %v1156 = vpack.c.b16 %v920, %v916
    %v1157 = vpack.c.b16 %v921, %v917
    %v1158 = vpack.c.b16 %v926, %v922
    %v1159 = vpack.c.b16 %v927, %v923
    %v1160 = vpack.c.b16 %v928, %v924
    %v1161 = vpack.c.b16 %v929, %v925
    %v1162 = vpack.c.b16 %v934, %v930
    %v1163 = vpack.c.b16 %v935, %v931
    %v1164 = vpack.c.b16 %v936, %v932
    %v1165 = vpack.c.b16 %v937, %v933
    %v1166 = vpack.c.b16 %v942, %v938
    %v1167 = vpack.c.b16 %v943, %v939
    %v1168 = vpack.c.b16 %v944, %v940
    %v1169 = vpack.c.b16 %v945, %v941
    %v1170 = vpack.c.b16 %v950, %v946
    %v1171 = vpack.c.b16 %v951, %v947
    %v1172 = vpack.c.b16 %v952, %v948
    %v1173 = vpack.c.b16 %v953, %v949
    %v1174 = vpack.c.b16 %v958, %v954
    %v1175 = vpack.c.b16 %v959, %v955
    %v1176 = vpack.c.b16 %v960, %v956
    %v1177 = vpack.c.b16 %v961, %v957
    %v1178 = vpack.c.b16 %v966, %v962
    %v1179 = vpack.c.b16 %v967, %v963
    %v1180 = vpack.c.b16 %v968, %v964
    %v1181 = vpack.c.b16 %v969, %v965
    %v1182 = vpack.c.b16 %v974, %v970
    %v1183 = vpack.c.b16 %v975, %v971
    %v1184 = vpack.c.b16 %v976, %v972
    %v1185 = vpack.c.b16 %v977, %v973
    %v1186 = vpack.c.b16 %v982, %v978
    %v1187 = vpack.c.b16 %v983, %v979
    %v1188 = vpack.c.b16 %v984, %v980
    %v1189 = vpack.c.b16 %v985, %v981
    %v1190 = vpack.c.b16 %v990, %v986
    %v1191 = vpack.c.b16 %v991, %v987
    %v1192 = vpack.c.b16 %v992, %v988
    %v1193 = vpack.c.b16 %v993, %v989
    %v1194 = vpack.c.b16 %v998, %v994
    %v1195 = vpack.c.b16 %v999, %v995
    %v1196 = vpack.c.b16 %v1000, %v996
    %v1197 = vpack.c.b16 %v1001, %v997
    %vm1394 = vcmask 130048
    %v1396 = vsel %vm1394, %v207, 0
    %1398 = vmatpush.bf16.msra.mxu0 %v1030
    %1399 = vmatpush.bf16.msra.mxu0 %v1026
    %1400 = vmatpush.bf16.msra.mxu0 %v1022
    %1401 = vmatpush.bf16.msra.mxu0 %v1018
    %1402 = vmatpush.bf16.msra.mxu0 %v1014
    %1403 = vmatpush.bf16.msra.mxu0 %v1010
    %1404 = vmatpush.bf16.msra.mxu0 %v1006
    %1405 = vmatpush.bf16.msra.mxu0 %v1002
    %1406 = vmatmul.bf16.gmra.mxu0 %v201
    %v1407 = vpop.f32.mrf.mxu0
    %v1408 = vadd.f32 %v406, %v1407
    %v1409 = vpop.f32.mrf.mxu0
    %v1410 = vadd.f32 %v406, %v1409
    %1411 = vdwg.mxu0
    %1412 = vmatpush.bf16.msra.mxu0 %v1062
    %1413 = vmatpush.bf16.msra.mxu0 %v1058
    %1414 = vmatpush.bf16.msra.mxu0 %v1054
    %1415 = vmatpush.bf16.msra.mxu0 %v1050
    %1416 = vmatpush.bf16.msra.mxu0 %v1046
    %1417 = vmatpush.bf16.msra.mxu0 %v1042
    %1418 = vmatpush.bf16.msra.mxu0 %v1038
    %1419 = vmatpush.bf16.msra.mxu0 %v1034
    %1420 = vmatmul.bf16.gmra.mxu0 %v202
    %v1421 = vpop.f32.mrf.mxu0
    %v1422 = vadd.f32 %v1408, %v1421
    %v1423 = vpop.f32.mrf.mxu0
    %v1424 = vadd.f32 %v1410, %v1423
    %1425 = vdwg.mxu0
    %1426 = vmatpush.bf16.msra.mxu0 %v1094
    %1427 = vmatpush.bf16.msra.mxu0 %v1090
    %1428 = vmatpush.bf16.msra.mxu0 %v1086
    %1429 = vmatpush.bf16.msra.mxu0 %v1082
    %1430 = vmatpush.bf16.msra.mxu0 %v1078
    %1431 = vmatpush.bf16.msra.mxu0 %v1074
    %1432 = vmatpush.bf16.msra.mxu0 %v1070
    %1433 = vmatpush.bf16.msra.mxu0 %v1066
    %1434 = vmatmul.bf16.gmra.mxu0 %v203
    %v1435 = vpop.f32.mrf.mxu0
    %v1436 = vadd.f32 %v1422, %v1435
    %v1437 = vpop.f32.mrf.mxu0
    %v1438 = vadd.f32 %v1424, %v1437
    %1439 = vdwg.mxu0
    %1440 = vmatpush.bf16.msra.mxu0 %v1126
    %1441 = vmatpush.bf16.msra.mxu0 %v1122
    %1442 = vmatpush.bf16.msra.mxu0 %v1118
    %1443 = vmatpush.bf16.msra.mxu0 %v1114
    %1444 = vmatpush.bf16.msra.mxu0 %v1110
    %1445 = vmatpush.bf16.msra.mxu0 %v1106
    %1446 = vmatpush.bf16.msra.mxu0 %v1102
    %1447 = vmatpush.bf16.msra.mxu0 %v1098
    %1448 = vmatmul.bf16.gmra.mxu0 %v204
    %v1449 = vpop.f32.mrf.mxu0
    %v1450 = vadd.f32 %v1436, %v1449
    %v1451 = vpop.f32.mrf.mxu0
    %v1452 = vadd.f32 %v1438, %v1451
    %1453 = vdwg.mxu0
    %1454 = vmatpush.bf16.msra.mxu0 %v1158
    %1455 = vmatpush.bf16.msra.mxu0 %v1154
    %1456 = vmatpush.bf16.msra.mxu0 %v1150
    %1457 = vmatpush.bf16.msra.mxu0 %v1146
    %1458 = vmatpush.bf16.msra.mxu0 %v1142
    %1459 = vmatpush.bf16.msra.mxu0 %v1138
    %1460 = vmatpush.bf16.msra.mxu0 %v1134
    %1461 = vmatpush.bf16.msra.mxu0 %v1130
    %1462 = vmatmul.bf16.gmra.mxu0 %v205
    %v1463 = vpop.f32.mrf.mxu0
    %v1464 = vadd.f32 %v1450, %v1463
    %v1465 = vpop.f32.mrf.mxu0
    %v1466 = vadd.f32 %v1452, %v1465
    %1467 = vdwg.mxu0
    %1468 = vmatpush.bf16.msra.mxu0 %v1190
    %1469 = vmatpush.bf16.msra.mxu0 %v1186
    %1470 = vmatpush.bf16.msra.mxu0 %v1182
    %1471 = vmatpush.bf16.msra.mxu0 %v1178
    %1472 = vmatpush.bf16.msra.mxu0 %v1174
    %1473 = vmatpush.bf16.msra.mxu0 %v1170
    %1474 = vmatpush.bf16.msra.mxu0 %v1166
    %1475 = vmatpush.bf16.msra.mxu0 %v1162
    %1476 = vmatmul.bf16.gmra.mxu0 %v206
    %v1477 = vpop.f32.mrf.mxu0
    %v1478 = vadd.f32 %v1464, %v1477
    %v1479 = vpop.f32.mrf.mxu0
    %v1480 = vadd.f32 %v1466, %v1479
    %1481 = vdwg.mxu0
    %1482 = vmatpush.bf16.msra.mxu0 0
    %1483 = vmatpush.bf16.msra.mxu0 0
    %1484 = vmatpush.bf16.msra.mxu0 0
    %1485 = vmatpush.bf16.msra.mxu0 0
    %1486 = vmatpush.bf16.msra.mxu0 0
    %1487 = vmatpush.bf16.msra.mxu0 0
    %1488 = vmatpush.bf16.msra.mxu0 0
    %1489 = vmatpush.bf16.msra.mxu0 %v1194
    %1490 = vmatmul.bf16.gmra.mxu0 %v1396
    %v1491 = vpop.f32.mrf.mxu0
    %v1492 = vadd.f32 %v1478, %v1491
    %v1493 = vpop.f32.mrf.mxu0
    %v1494 = vadd.f32 %v1480, %v1493
    %1495 = vdwg.mxu0
    %1496 = vmatpush.bf16.msra.mxu0 %v1031
    %1497 = vmatpush.bf16.msra.mxu0 %v1027
    %1498 = vmatpush.bf16.msra.mxu0 %v1023
    %1499 = vmatpush.bf16.msra.mxu0 %v1019
    %1500 = vmatpush.bf16.msra.mxu0 %v1015
    %1501 = vmatpush.bf16.msra.mxu0 %v1011
    %1502 = vmatpush.bf16.msra.mxu0 %v1007
    %1503 = vmatpush.bf16.msra.mxu0 %v1003
    %1504 = vmatmul.bf16.gmra.mxu0 %v201
    %v1505 = vpop.f32.mrf.mxu0
    %v1506 = vadd.f32 %v407, %v1505
    %v1507 = vpop.f32.mrf.mxu0
    %v1508 = vadd.f32 %v407, %v1507
    %1509 = vdwg.mxu0
    %1510 = vmatpush.bf16.msra.mxu0 %v1063
    %1511 = vmatpush.bf16.msra.mxu0 %v1059
    %1512 = vmatpush.bf16.msra.mxu0 %v1055
    %1513 = vmatpush.bf16.msra.mxu0 %v1051
    %1514 = vmatpush.bf16.msra.mxu0 %v1047
    %1515 = vmatpush.bf16.msra.mxu0 %v1043
    %1516 = vmatpush.bf16.msra.mxu0 %v1039
    %1517 = vmatpush.bf16.msra.mxu0 %v1035
    %1518 = vmatmul.bf16.gmra.mxu0 %v202
    %v1519 = vpop.f32.mrf.mxu0
    %v1520 = vadd.f32 %v1506, %v1519
    %v1521 = vpop.f32.mrf.mxu0
    %v1522 = vadd.f32 %v1508, %v1521
    %1523 = vdwg.mxu0
    %1524 = vmatpush.bf16.msra.mxu0 %v1095
    %1525 = vmatpush.bf16.msra.mxu0 %v1091
    %1526 = vmatpush.bf16.msra.mxu0 %v1087
    %1527 = vmatpush.bf16.msra.mxu0 %v1083
    %1528 = vmatpush.bf16.msra.mxu0 %v1079
    %1529 = vmatpush.bf16.msra.mxu0 %v1075
    %1530 = vmatpush.bf16.msra.mxu0 %v1071
    %1531 = vmatpush.bf16.msra.mxu0 %v1067
    %1532 = vmatmul.bf16.gmra.mxu0 %v203
    %v1533 = vpop.f32.mrf.mxu0
    %v1534 = vadd.f32 %v1520, %v1533
    %v1535 = vpop.f32.mrf.mxu0
    %v1536 = vadd.f32 %v1522, %v1535
    %1537 = vdwg.mxu0
    %1538 = vmatpush.bf16.msra.mxu0 %v1127
    %1539 = vmatpush.bf16.msra.mxu0 %v1123
    %1540 = vmatpush.bf16.msra.mxu0 %v1119
    %1541 = vmatpush.bf16.msra.mxu0 %v1115
    %1542 = vmatpush.bf16.msra.mxu0 %v1111
    %1543 = vmatpush.bf16.msra.mxu0 %v1107
    %1544 = vmatpush.bf16.msra.mxu0 %v1103
    %1545 = vmatpush.bf16.msra.mxu0 %v1099
    %1546 = vmatmul.bf16.gmra.mxu0 %v204
    %v1547 = vpop.f32.mrf.mxu0
    %v1548 = vadd.f32 %v1534, %v1547
    %v1549 = vpop.f32.mrf.mxu0
    %v1550 = vadd.f32 %v1536, %v1549
    %1551 = vdwg.mxu0
    %1552 = vmatpush.bf16.msra.mxu0 %v1159
    %1553 = vmatpush.bf16.msra.mxu0 %v1155
    %1554 = vmatpush.bf16.msra.mxu0 %v1151
    %1555 = vmatpush.bf16.msra.mxu0 %v1147
    %1556 = vmatpush.bf16.msra.mxu0 %v1143
    %1557 = vmatpush.bf16.msra.mxu0 %v1139
    %1558 = vmatpush.bf16.msra.mxu0 %v1135
    %1559 = vmatpush.bf16.msra.mxu0 %v1131
    %1560 = vmatmul.bf16.gmra.mxu0 %v205
    %v1561 = vpop.f32.mrf.mxu0
    %v1562 = vadd.f32 %v1548, %v1561
    %v1563 = vpop.f32.mrf.mxu0
    %v1564 = vadd.f32 %v1550, %v1563
    %1565 = vdwg.mxu0
    %1566 = vmatpush.bf16.msra.mxu0 %v1191
    %1567 = vmatpush.bf16.msra.mxu0 %v1187
    %1568 = vmatpush.bf16.msra.mxu0 %v1183
    %1569 = vmatpush.bf16.msra.mxu0 %v1179
    %1570 = vmatpush.bf16.msra.mxu0 %v1175
    %1571 = vmatpush.bf16.msra.mxu0 %v1171
    %1572 = vmatpush.bf16.msra.mxu0 %v1167
    %1573 = vmatpush.bf16.msra.mxu0 %v1163
    %1574 = vmatmul.bf16.gmra.mxu0 %v206
    %v1575 = vpop.f32.mrf.mxu0
    %v1576 = vadd.f32 %v1562, %v1575
    %v1577 = vpop.f32.mrf.mxu0
    %v1578 = vadd.f32 %v1564, %v1577
    %1579 = vdwg.mxu0
    %1580 = vmatpush.bf16.msra.mxu0 0
    %1581 = vmatpush.bf16.msra.mxu0 0
    %1582 = vmatpush.bf16.msra.mxu0 0
    %1583 = vmatpush.bf16.msra.mxu0 0
    %1584 = vmatpush.bf16.msra.mxu0 0
    %1585 = vmatpush.bf16.msra.mxu0 0
    %1586 = vmatpush.bf16.msra.mxu0 0
    %1587 = vmatpush.bf16.msra.mxu0 %v1195
    %1588 = vmatmul.bf16.gmra.mxu0 %v1396
    %v1589 = vpop.f32.mrf.mxu0
    %v1590 = vadd.f32 %v1576, %v1589
    %v1591 = vpop.f32.mrf.mxu0
    %v1592 = vadd.f32 %v1578, %v1591
    %1593 = vdwg.mxu0
    %1594 = vmatpush.bf16.msra.mxu0 %v1032
    %1595 = vmatpush.bf16.msra.mxu0 %v1028
    %1596 = vmatpush.bf16.msra.mxu0 %v1024
    %1597 = vmatpush.bf16.msra.mxu0 %v1020
    %1598 = vmatpush.bf16.msra.mxu0 %v1016
    %1599 = vmatpush.bf16.msra.mxu0 %v1012
    %1600 = vmatpush.bf16.msra.mxu0 %v1008
    %1601 = vmatpush.bf16.msra.mxu0 %v1004
    %1602 = vmatmul.bf16.gmra.mxu0 %v201
    %v1603 = vpop.f32.mrf.mxu0
    %v1604 = vadd.f32 %v408, %v1603
    %v1605 = vpop.f32.mrf.mxu0
    %v1606 = vadd.f32 %v408, %v1605
    %1607 = vdwg.mxu0
    %1608 = vmatpush.bf16.msra.mxu0 %v1064
    %1609 = vmatpush.bf16.msra.mxu0 %v1060
    %1610 = vmatpush.bf16.msra.mxu0 %v1056
    %1611 = vmatpush.bf16.msra.mxu0 %v1052
    %1612 = vmatpush.bf16.msra.mxu0 %v1048
    %1613 = vmatpush.bf16.msra.mxu0 %v1044
    %1614 = vmatpush.bf16.msra.mxu0 %v1040
    %1615 = vmatpush.bf16.msra.mxu0 %v1036
    %1616 = vmatmul.bf16.gmra.mxu0 %v202
    %v1617 = vpop.f32.mrf.mxu0
    %v1618 = vadd.f32 %v1604, %v1617
    %v1619 = vpop.f32.mrf.mxu0
    %v1620 = vadd.f32 %v1606, %v1619
    %1621 = vdwg.mxu0
    %1622 = vmatpush.bf16.msra.mxu0 %v1096
    %1623 = vmatpush.bf16.msra.mxu0 %v1092
    %1624 = vmatpush.bf16.msra.mxu0 %v1088
    %1625 = vmatpush.bf16.msra.mxu0 %v1084
    %1626 = vmatpush.bf16.msra.mxu0 %v1080
    %1627 = vmatpush.bf16.msra.mxu0 %v1076
    %1628 = vmatpush.bf16.msra.mxu0 %v1072
    %1629 = vmatpush.bf16.msra.mxu0 %v1068
    %1630 = vmatmul.bf16.gmra.mxu0 %v203
    %v1631 = vpop.f32.mrf.mxu0
    %v1632 = vadd.f32 %v1618, %v1631
    %v1633 = vpop.f32.mrf.mxu0
    %v1634 = vadd.f32 %v1620, %v1633
    %1635 = vdwg.mxu0
    %1636 = vmatpush.bf16.msra.mxu0 %v1128
    %1637 = vmatpush.bf16.msra.mxu0 %v1124
    %1638 = vmatpush.bf16.msra.mxu0 %v1120
    %1639 = vmatpush.bf16.msra.mxu0 %v1116
    %1640 = vmatpush.bf16.msra.mxu0 %v1112
    %1641 = vmatpush.bf16.msra.mxu0 %v1108
    %1642 = vmatpush.bf16.msra.mxu0 %v1104
    %1643 = vmatpush.bf16.msra.mxu0 %v1100
    %1644 = vmatmul.bf16.gmra.mxu0 %v204
    %v1645 = vpop.f32.mrf.mxu0
    %v1646 = vadd.f32 %v1632, %v1645
    %v1647 = vpop.f32.mrf.mxu0
    %v1648 = vadd.f32 %v1634, %v1647
    %1649 = vdwg.mxu0
    %1650 = vmatpush.bf16.msra.mxu0 %v1160
    %1651 = vmatpush.bf16.msra.mxu0 %v1156
    %1652 = vmatpush.bf16.msra.mxu0 %v1152
    %1653 = vmatpush.bf16.msra.mxu0 %v1148
    %1654 = vmatpush.bf16.msra.mxu0 %v1144
    %1655 = vmatpush.bf16.msra.mxu0 %v1140
    %1656 = vmatpush.bf16.msra.mxu0 %v1136
    %1657 = vmatpush.bf16.msra.mxu0 %v1132
    %1658 = vmatmul.bf16.gmra.mxu0 %v205
    %v1659 = vpop.f32.mrf.mxu0
    %v1660 = vadd.f32 %v1646, %v1659
    %v1661 = vpop.f32.mrf.mxu0
    %v1662 = vadd.f32 %v1648, %v1661
    %1663 = vdwg.mxu0
    %1664 = vmatpush.bf16.msra.mxu0 %v1192
    %1665 = vmatpush.bf16.msra.mxu0 %v1188
    %1666 = vmatpush.bf16.msra.mxu0 %v1184
    %1667 = vmatpush.bf16.msra.mxu0 %v1180
    %1668 = vmatpush.bf16.msra.mxu0 %v1176
    %1669 = vmatpush.bf16.msra.mxu0 %v1172
    %1670 = vmatpush.bf16.msra.mxu0 %v1168
    %1671 = vmatpush.bf16.msra.mxu0 %v1164
    %1672 = vmatmul.bf16.gmra.mxu0 %v206
    %v1673 = vpop.f32.mrf.mxu0
    %v1674 = vadd.f32 %v1660, %v1673
    %v1675 = vpop.f32.mrf.mxu0
    %v1676 = vadd.f32 %v1662, %v1675
    %1677 = vdwg.mxu0
    %1678 = vmatpush.bf16.msra.mxu0 0
    %1679 = vmatpush.bf16.msra.mxu0 0
    %1680 = vmatpush.bf16.msra.mxu0 0
    %1681 = vmatpush.bf16.msra.mxu0 0
    %1682 = vmatpush.bf16.msra.mxu0 0
    %1683 = vmatpush.bf16.msra.mxu0 0
    %1684 = vmatpush.bf16.msra.mxu0 0
    %1685 = vmatpush.bf16.msra.mxu0 %v1196
    %1686 = vmatmul.bf16.gmra.mxu0 %v1396
    %v1687 = vpop.f32.mrf.mxu0
    %v1688 = vadd.f32 %v1674, %v1687
    %v1689 = vpop.f32.mrf.mxu0
    %v1690 = vadd.f32 %v1676, %v1689
    %1691 = vdwg.mxu0
    %1692 = vmatpush.bf16.msra.mxu0 %v1033
    %1693 = vmatpush.bf16.msra.mxu0 %v1029
    %1694 = vmatpush.bf16.msra.mxu0 %v1025
    %1695 = vmatpush.bf16.msra.mxu0 %v1021
    %1696 = vmatpush.bf16.msra.mxu0 %v1017
    %1697 = vmatpush.bf16.msra.mxu0 %v1013
    %1698 = vmatpush.bf16.msra.mxu0 %v1009
    %1699 = vmatpush.bf16.msra.mxu0 %v1005
    %1700 = vmatmul.bf16.gmra.mxu0 %v201
    %v1701 = vpop.f32.mrf.mxu0
    %v1702 = vadd.f32 %v409, %v1701
    %v1703 = vpop.f32.mrf.mxu0
    %v1704 = vadd.f32 %v409, %v1703
    %1705 = vdwg.mxu0
    %1706 = vmatpush.bf16.msra.mxu0 %v1065
    %1707 = vmatpush.bf16.msra.mxu0 %v1061
    %1708 = vmatpush.bf16.msra.mxu0 %v1057
    %1709 = vmatpush.bf16.msra.mxu0 %v1053
    %1710 = vmatpush.bf16.msra.mxu0 %v1049
    %1711 = vmatpush.bf16.msra.mxu0 %v1045
    %1712 = vmatpush.bf16.msra.mxu0 %v1041
    %1713 = vmatpush.bf16.msra.mxu0 %v1037
    %1714 = vmatmul.bf16.gmra.mxu0 %v202
    %v1715 = vpop.f32.mrf.mxu0
    %v1716 = vadd.f32 %v1702, %v1715
    %v1717 = vpop.f32.mrf.mxu0
    %v1718 = vadd.f32 %v1704, %v1717
    %1719 = vdwg.mxu0
    %1720 = vmatpush.bf16.msra.mxu0 %v1097
    %1721 = vmatpush.bf16.msra.mxu0 %v1093
    %1722 = vmatpush.bf16.msra.mxu0 %v1089
    %1723 = vmatpush.bf16.msra.mxu0 %v1085
    %1724 = vmatpush.bf16.msra.mxu0 %v1081
    %1725 = vmatpush.bf16.msra.mxu0 %v1077
    %1726 = vmatpush.bf16.msra.mxu0 %v1073
    %1727 = vmatpush.bf16.msra.mxu0 %v1069
    %1728 = vmatmul.bf16.gmra.mxu0 %v203
    %v1729 = vpop.f32.mrf.mxu0
    %v1730 = vadd.f32 %v1716, %v1729
    %v1731 = vpop.f32.mrf.mxu0
    %v1732 = vadd.f32 %v1718, %v1731
    %1733 = vdwg.mxu0
    %1734 = vmatpush.bf16.msra.mxu0 %v1129
    %1735 = vmatpush.bf16.msra.mxu0 %v1125
    %1736 = vmatpush.bf16.msra.mxu0 %v1121
    %1737 = vmatpush.bf16.msra.mxu0 %v1117
    %1738 = vmatpush.bf16.msra.mxu0 %v1113
    %1739 = vmatpush.bf16.msra.mxu0 %v1109
    %1740 = vmatpush.bf16.msra.mxu0 %v1105
    %1741 = vmatpush.bf16.msra.mxu0 %v1101
    %1742 = vmatmul.bf16.gmra.mxu0 %v204
    %v1743 = vpop.f32.mrf.mxu0
    %v1744 = vadd.f32 %v1730, %v1743
    %v1745 = vpop.f32.mrf.mxu0
    %v1746 = vadd.f32 %v1732, %v1745
    %1747 = vdwg.mxu0
    %1748 = vmatpush.bf16.msra.mxu0 %v1161
    %1749 = vmatpush.bf16.msra.mxu0 %v1157
    %1750 = vmatpush.bf16.msra.mxu0 %v1153
    %1751 = vmatpush.bf16.msra.mxu0 %v1149
    %1752 = vmatpush.bf16.msra.mxu0 %v1145
    %1753 = vmatpush.bf16.msra.mxu0 %v1141
    %1754 = vmatpush.bf16.msra.mxu0 %v1137
    %1755 = vmatpush.bf16.msra.mxu0 %v1133
    %1756 = vmatmul.bf16.gmra.mxu0 %v205
    %v1757 = vpop.f32.mrf.mxu0
    %v1758 = vadd.f32 %v1744, %v1757
    %v1759 = vpop.f32.mrf.mxu0
    %v1760 = vadd.f32 %v1746, %v1759
    %1761 = vdwg.mxu0
    %1762 = vmatpush.bf16.msra.mxu0 %v1193
    %1763 = vmatpush.bf16.msra.mxu0 %v1189
    %1764 = vmatpush.bf16.msra.mxu0 %v1185
    %1765 = vmatpush.bf16.msra.mxu0 %v1181
    %1766 = vmatpush.bf16.msra.mxu0 %v1177
    %1767 = vmatpush.bf16.msra.mxu0 %v1173
    %1768 = vmatpush.bf16.msra.mxu0 %v1169
    %1769 = vmatpush.bf16.msra.mxu0 %v1165
    %1770 = vmatmul.bf16.gmra.mxu0 %v206
    %v1771 = vpop.f32.mrf.mxu0
    %v1772 = vadd.f32 %v1758, %v1771
    %v1773 = vpop.f32.mrf.mxu0
    %v1774 = vadd.f32 %v1760, %v1773
    %1775 = vdwg.mxu0
    %1776 = vmatpush.bf16.msra.mxu0 0
    %1777 = vmatpush.bf16.msra.mxu0 0
    %1778 = vmatpush.bf16.msra.mxu0 0
    %1779 = vmatpush.bf16.msra.mxu0 0
    %1780 = vmatpush.bf16.msra.mxu0 0
    %1781 = vmatpush.bf16.msra.mxu0 0
    %1782 = vmatpush.bf16.msra.mxu0 0
    %1783 = vmatpush.bf16.msra.mxu0 %v1197
    %1784 = vmatmul.bf16.gmra.mxu0 %v1396
    %v1785 = vpop.f32.mrf.mxu0
    %v1786 = vadd.f32 %v1772, %v1785
    %v1787 = vpop.f32.mrf.mxu0
    %v1788 = vadd.f32 %v1774, %v1787
    %1789 = vdwg.mxu0
    %v1790 = vmax.f32 %v1492, 0.0
    %v1791 = vmax.f32 %v1590, 0.0
    %v1792 = vmax.f32 %v1688, 0.0
    %v1793 = vmax.f32 %v1786, 0.0
    %v1794 = vmax.f32 %v1494, 0.0
    %v1795 = vmax.f32 %v1592, 0.0
    %v1796 = vmax.f32 %v1690, 0.0
    %v1797 = vmax.f32 %v1788, 0.0
    %v1798 = vpack.c.bf16 %v1794, %v1790
    %v1799 = vpack.c.bf16 %v1795, %v1791
    %v1800 = vpack.c.bf16 %v1796, %v1792
    %v1801 = vpack.c.bf16 %v1797, %v1793
    %v1802 = vld [vmem:[#allocation8] sm:$0xff]
    %v1803 = vld [vmem:[#allocation8 + $0x8] sm:$0xff]
    %v1804 = vld [vmem:[#allocation8 + $0x10] sm:$0xff]
    %v1805 = vld [vmem:[#allocation8 + $0x18] sm:$0xff]
    %v1806 = vld [vmem:[#allocation8 + $0x20] sm:$0xff]
    %v1807 = vld [vmem:[#allocation8 + $0x28] sm:$0xff]
    %v1808 = vld [vmem:[#allocation8 + $0x30] sm:$0xff]
    %v1809 = vld [vmem:[#allocation8 + $0x38] sm:$0xff]
    %v1810 = vld [vmem:[#allocation8 + $0x40] sm:$0xff]
    %v1811 = vld [vmem:[#allocation8 + $0x48] sm:$0xff]
    %v1812 = vld [vmem:[#allocation8 + $0x50] sm:$0xff]
    %v1813 = vld [vmem:[#allocation8 + $0x58] sm:$0xff]
    %v1814 = vld [vmem:[#allocation8 + $0x60] sm:$0xff]
    %v1815 = vld [vmem:[#allocation8 + $0x68] sm:$0xff]
    %v1816 = vld [vmem:[#allocation8 + $0x70] sm:$0xff]
    %v1817 = vld [vmem:[#allocation8 + $0x78] sm:$0xff]
    %v1818 = vld [vmem:[#allocation8 + $0x80] sm:$0xff]
    %v1819 = vld [vmem:[#allocation8 + $0x88] sm:$0xff]
    %v1820 = vld [vmem:[#allocation8 + $0x90] sm:$0xff]
    %v1821 = vld [vmem:[#allocation8 + $0x98] sm:$0xff]
    %v1822 = vld [vmem:[#allocation8 + $0xa0] sm:$0xff]
    %v1823 = vld [vmem:[#allocation8 + $0xa8] sm:$0xff]
    %v1824 = vld [vmem:[#allocation8 + $0xb0] sm:$0xff]
    %v1825 = vld [vmem:[#allocation8 + $0xb8] sm:$0xff]
    %v1826 = vld [vmem:[#allocation8 + $0xc0] sm:$0xff]
    %v1827 = vld [vmem:[#allocation8 + $0xc8] sm:$0xff]
    %v1828 = vld [vmem:[#allocation8 + $0xd0] sm:$0xff]
    %v1829 = vld [vmem:[#allocation8 + $0xd8] sm:$0xff]
    %v1830 = vld [vmem:[#allocation8 + $0xe0] sm:$0xff]
    %v1831 = vld [vmem:[#allocation8 + $0xe8] sm:$0xff]
    %v1832 = vld [vmem:[#allocation8 + $0xf0] sm:$0xff]
    %v1833 = vld [vmem:[#allocation8 + $0xf8] sm:$0xff]
    %v1834 = vld [vmem:[#allocation8 + $0x100] sm:$0xff]
    %v1835 = vld [vmem:[#allocation8 + $0x108] sm:$0xff]
    %v1836 = vld [vmem:[#allocation8 + $0x110] sm:$0xff]
    %v1837 = vld [vmem:[#allocation8 + $0x118] sm:$0xff]
    %v1838 = vld [vmem:[#allocation8 + $0x120] sm:$0xff]
    %v1839 = vld [vmem:[#allocation8 + $0x128] sm:$0xff]
    %v1840 = vld [vmem:[#allocation8 + $0x130] sm:$0xff]
    %v1841 = vld [vmem:[#allocation8 + $0x138] sm:$0xff]
    %v1842 = vld [vmem:[#allocation8 + $0x140] sm:$0xff]
    %v1843 = vld [vmem:[#allocation8 + $0x148] sm:$0xff]
    %v1844 = vld [vmem:[#allocation8 + $0x150] sm:$0xff]
    %v1845 = vld [vmem:[#allocation8 + $0x158] sm:$0xff]
    %v1846 = vld [vmem:[#allocation8 + $0x160] sm:$0xff]
    %v1847 = vld [vmem:[#allocation8 + $0x168] sm:$0xff]
    %v1848 = vld [vmem:[#allocation8 + $0x170] sm:$0xff]
    %v1849 = vld [vmem:[#allocation8 + $0x178] sm:$0xff]
    %v1850 = vld [vmem:[#allocation8 + $0x180] sm:$0xff]
    %v1851 = vld [vmem:[#allocation8 + $0x188] sm:$0xff]
    %v1852 = vld [vmem:[#allocation8 + $0x190] sm:$0xff]
    %v1853 = vld [vmem:[#allocation8 + $0x198] sm:$0xff]
    %v1854 = vld [vmem:[#allocation8 + $0x1a0] sm:$0xff]
    %v1855 = vld [vmem:[#allocation8 + $0x1a8] sm:$0xff]
    %v1856 = vld [vmem:[#allocation8 + $0x1b0] sm:$0xff]
    %v1857 = vld [vmem:[#allocation8 + $0x1b8] sm:$0xff]
    %v1858 = vld [vmem:[#allocation8 + $0x1c0] sm:$0xff]
    %v1859 = vld [vmem:[#allocation8 + $0x1c8] sm:$0xff]
    %v1860 = vld [vmem:[#allocation8 + $0x1d0] sm:$0xff]
    %v1861 = vld [vmem:[#allocation8 + $0x1d8] sm:$0xff]
    %v1862 = vld [vmem:[#allocation8 + $0x1e0] sm:$0xff]
    %v1863 = vld [vmem:[#allocation8 + $0x1e8] sm:$0xff]
    %v1864 = vld [vmem:[#allocation8 + $0x1f0] sm:$0xff]
    %v1865 = vld [vmem:[#allocation8 + $0x1f8] sm:$0xff]
    %v1866 = vld [vmem:[#allocation8 + $0x200] sm:$0xff]
    %v1867 = vld [vmem:[#allocation8 + $0x208] sm:$0xff]
    %v1868 = vld [vmem:[#allocation8 + $0x210] sm:$0xff]
    %v1869 = vld [vmem:[#allocation8 + $0x218] sm:$0xff]
    %v1870 = vld [vmem:[#allocation8 + $0x220] sm:$0xff]
    %v1871 = vld [vmem:[#allocation8 + $0x228] sm:$0xff]
    %v1872 = vld [vmem:[#allocation8 + $0x230] sm:$0xff]
    %v1873 = vld [vmem:[#allocation8 + $0x238] sm:$0xff]
    %v1874 = vld [vmem:[#allocation8 + $0x240] sm:$0xff]
    %v1875 = vld [vmem:[#allocation8 + $0x248] sm:$0xff]
    %v1876 = vld [vmem:[#allocation8 + $0x250] sm:$0xff]
    %v1877 = vld [vmem:[#allocation8 + $0x258] sm:$0xff]
    %v1878 = vld [vmem:[#allocation8 + $0x260] sm:$0xff]
    %v1879 = vld [vmem:[#allocation8 + $0x268] sm:$0xff]
    %v1880 = vld [vmem:[#allocation8 + $0x270] sm:$0xff]
    %v1881 = vld [vmem:[#allocation8 + $0x278] sm:$0xff]
    %v1882 = vld [vmem:[#allocation8 + $0x280] sm:$0xff]
    %v1883 = vld [vmem:[#allocation8 + $0x288] sm:$0xff]
    %v1884 = vld [vmem:[#allocation8 + $0x290] sm:$0xff]
    %v1885 = vld [vmem:[#allocation8 + $0x298] sm:$0xff]
    %v1886 = vld [vmem:[#allocation8 + $0x2a0] sm:$0xff]
    %v1887 = vld [vmem:[#allocation8 + $0x2a8] sm:$0xff]
    %v1888 = vld [vmem:[#allocation8 + $0x2b0] sm:$0xff]
    %v1889 = vld [vmem:[#allocation8 + $0x2b8] sm:$0xff]
    %v1890 = vld [vmem:[#allocation8 + $0x2c0] sm:$0xff]
    %v1891 = vld [vmem:[#allocation8 + $0x2c8] sm:$0xff]
    %v1892 = vld [vmem:[#allocation8 + $0x2d0] sm:$0xff]
    %v1893 = vld [vmem:[#allocation8 + $0x2d8] sm:$0xff]
    %v1894 = vld [vmem:[#allocation8 + $0x2e0] sm:$0xff]
    %v1895 = vld [vmem:[#allocation8 + $0x2e8] sm:$0xff]
    %v1896 = vld [vmem:[#allocation8 + $0x2f0] sm:$0xff]
    %v1897 = vld [vmem:[#allocation8 + $0x2f8] sm:$0xff]
    %v1898 = vld [vmem:[#allocation8 + $0x300] sm:$0xff]
    %v1899 = vld [vmem:[#allocation8 + $0x308] sm:$0xff]
    %v1900 = vld [vmem:[#allocation8 + $0x310] sm:$0xff]
    %v1901 = vld [vmem:[#allocation8 + $0x318] sm:$0xff]
    %v1902 = vld [vmem:[#allocation8 + $0x320] sm:$0xff]
    %v1903 = vld [vmem:[#allocation8 + $0x328] sm:$0xff]
    %v1904 = vld [vmem:[#allocation8 + $0x330] sm:$0xff]
    %v1905 = vld [vmem:[#allocation8 + $0x338] sm:$0xff]
    %v1906 = vld [vmem:[#allocation8 + $0x340] sm:$0xff]
    %v1907 = vld [vmem:[#allocation8 + $0x348] sm:$0xff]
    %v1908 = vld [vmem:[#allocation8 + $0x350] sm:$0xff]
    %v1909 = vld [vmem:[#allocation8 + $0x358] sm:$0xff]
    %v1910 = vld [vmem:[#allocation8 + $0x360] sm:$0xff]
    %v1911 = vld [vmem:[#allocation8 + $0x368] sm:$0xff]
    %v1912 = vld [vmem:[#allocation8 + $0x370] sm:$0xff]
    %v1913 = vld [vmem:[#allocation8 + $0x378] sm:$0xff]
    %v1914 = vld [vmem:[#allocation8 + $0x380] sm:$0xff]
    %v1915 = vld [vmem:[#allocation8 + $0x388] sm:$0xff]
    %v1916 = vld [vmem:[#allocation8 + $0x390] sm:$0xff]
    %v1917 = vld [vmem:[#allocation8 + $0x398] sm:$0xff]
    %v1918 = vld [vmem:[#allocation8 + $0x3a0] sm:$0xff]
    %v1919 = vld [vmem:[#allocation8 + $0x3a8] sm:$0xff]
    %v1920 = vld [vmem:[#allocation8 + $0x3b0] sm:$0xff]
    %v1921 = vld [vmem:[#allocation8 + $0x3b8] sm:$0xff]
    %v1922 = vld [vmem:[#allocation8 + $0x3c0] sm:$0xff]
    %v1923 = vld [vmem:[#allocation8 + $0x3c8] sm:$0xff]
    %v1924 = vld [vmem:[#allocation8 + $0x3d0] sm:$0xff]
    %v1925 = vld [vmem:[#allocation8 + $0x3d8] sm:$0xff]
    %v1926 = vld [vmem:[#allocation8 + $0x3e0] sm:$0xff]
    %v1927 = vld [vmem:[#allocation8 + $0x3e8] sm:$0xff]
    %v1928 = vld [vmem:[#allocation8 + $0x3f0] sm:$0xff]
    %v1929 = vld [vmem:[#allocation8 + $0x3f8] sm:$0xff]
    %v1930 = vld [vmem:[#allocation10] sm:$0xf]
    %v1932 = vperm.slane %v1930, 0
    %v1933 = vperm.slane %v1930, 1
    %v1934 = vperm.slane %v1930, 2
    %v1935 = vperm.slane %v1930, 3
    %v2068 = vunpack.c.l.b16 %v1802
    %v2069 = vunpack.c.h.b16 %v1802
    %v2070 = vunpack.c.l.b16 %v1803
    %v2071 = vunpack.c.h.b16 %v1803
    %v2072 = vunpack.c.l.b16 %v1804
    %v2073 = vunpack.c.h.b16 %v1804
    %v2074 = vunpack.c.l.b16 %v1805
    %v2075 = vunpack.c.h.b16 %v1805
    %v2076 = vunpack.c.l.b16 %v1806
    %v2077 = vunpack.c.h.b16 %v1806
    %v2078 = vunpack.c.l.b16 %v1807
    %v2079 = vunpack.c.h.b16 %v1807
    %v2080 = vunpack.c.l.b16 %v1808
    %v2081 = vunpack.c.h.b16 %v1808
    %v2082 = vunpack.c.l.b16 %v1809
    %v2083 = vunpack.c.h.b16 %v1809
    %v2084 = vunpack.c.l.b16 %v1810
    %v2085 = vunpack.c.h.b16 %v1810
    %v2086 = vunpack.c.l.b16 %v1811
    %v2087 = vunpack.c.h.b16 %v1811
    %v2088 = vunpack.c.l.b16 %v1812
    %v2089 = vunpack.c.h.b16 %v1812
    %v2090 = vunpack.c.l.b16 %v1813
    %v2091 = vunpack.c.h.b16 %v1813
    %v2092 = vunpack.c.l.b16 %v1814
    %v2093 = vunpack.c.h.b16 %v1814
    %v2094 = vunpack.c.l.b16 %v1815
    %v2095 = vunpack.c.h.b16 %v1815
    %v2096 = vunpack.c.l.b16 %v1816
    %v2097 = vunpack.c.h.b16 %v1816
    %v2098 = vunpack.c.l.b16 %v1817
    %v2099 = vunpack.c.h.b16 %v1817
    %v2100 = vunpack.c.l.b16 %v1818
    %v2101 = vunpack.c.h.b16 %v1818
    %v2102 = vunpack.c.l.b16 %v1819
    %v2103 = vunpack.c.h.b16 %v1819
    %v2104 = vunpack.c.l.b16 %v1820
    %v2105 = vunpack.c.h.b16 %v1820
    %v2106 = vunpack.c.l.b16 %v1821
    %v2107 = vunpack.c.h.b16 %v1821
    %v2108 = vunpack.c.l.b16 %v1822
    %v2109 = vunpack.c.h.b16 %v1822
    %v2110 = vunpack.c.l.b16 %v1823
    %v2111 = vunpack.c.h.b16 %v1823
    %v2112 = vunpack.c.l.b16 %v1824
    %v2113 = vunpack.c.h.b16 %v1824
    %v2114 = vunpack.c.l.b16 %v1825
    %v2115 = vunpack.c.h.b16 %v1825
    %v2116 = vunpack.c.l.b16 %v1826
    %v2117 = vunpack.c.h.b16 %v1826
    %v2118 = vunpack.c.l.b16 %v1827
    %v2119 = vunpack.c.h.b16 %v1827
    %v2120 = vunpack.c.l.b16 %v1828
    %v2121 = vunpack.c.h.b16 %v1828
    %v2122 = vunpack.c.l.b16 %v1829
    %v2123 = vunpack.c.h.b16 %v1829
    %v2124 = vunpack.c.l.b16 %v1830
    %v2125 = vunpack.c.h.b16 %v1830
    %v2126 = vunpack.c.l.b16 %v1831
    %v2127 = vunpack.c.h.b16 %v1831
    %v2128 = vunpack.c.l.b16 %v1832
    %v2129 = vunpack.c.h.b16 %v1832
    %v2130 = vunpack.c.l.b16 %v1833
    %v2131 = vunpack.c.h.b16 %v1833
    %v2132 = vunpack.c.l.b16 %v1834
    %v2133 = vunpack.c.h.b16 %v1834
    %v2134 = vunpack.c.l.b16 %v1835
    %v2135 = vunpack.c.h.b16 %v1835
    %v2136 = vunpack.c.l.b16 %v1836
    %v2137 = vunpack.c.h.b16 %v1836
    %v2138 = vunpack.c.l.b16 %v1837
    %v2139 = vunpack.c.h.b16 %v1837
    %v2140 = vunpack.c.l.b16 %v1838
    %v2141 = vunpack.c.h.b16 %v1838
    %v2142 = vunpack.c.l.b16 %v1839
    %v2143 = vunpack.c.h.b16 %v1839
    %v2144 = vunpack.c.l.b16 %v1840
    %v2145 = vunpack.c.h.b16 %v1840
    %v2146 = vunpack.c.l.b16 %v1841
    %v2147 = vunpack.c.h.b16 %v1841
    %v2148 = vunpack.c.l.b16 %v1842
    %v2149 = vunpack.c.h.b16 %v1842
    %v2150 = vunpack.c.l.b16 %v1843
    %v2151 = vunpack.c.h.b16 %v1843
    %v2152 = vunpack.c.l.b16 %v1844
    %v2153 = vunpack.c.h.b16 %v1844
    %v2154 = vunpack.c.l.b16 %v1845
    %v2155 = vunpack.c.h.b16 %v1845
    %v2156 = vunpack.c.l.b16 %v1846
    %v2157 = vunpack.c.h.b16 %v1846
    %v2158 = vunpack.c.l.b16 %v1847
    %v2159 = vunpack.c.h.b16 %v1847
    %v2160 = vunpack.c.l.b16 %v1848
    %v2161 = vunpack.c.h.b16 %v1848
    %v2162 = vunpack.c.l.b16 %v1849
    %v2163 = vunpack.c.h.b16 %v1849
    %v2164 = vunpack.c.l.b16 %v1850
    %v2165 = vunpack.c.h.b16 %v1850
    %v2166 = vunpack.c.l.b16 %v1851
    %v2167 = vunpack.c.h.b16 %v1851
    %v2168 = vunpack.c.l.b16 %v1852
    %v2169 = vunpack.c.h.b16 %v1852
    %v2170 = vunpack.c.l.b16 %v1853
    %v2171 = vunpack.c.h.b16 %v1853
    %v2172 = vunpack.c.l.b16 %v1854
    %v2173 = vunpack.c.h.b16 %v1854
    %v2174 = vunpack.c.l.b16 %v1855
    %v2175 = vunpack.c.h.b16 %v1855
    %v2176 = vunpack.c.l.b16 %v1856
    %v2177 = vunpack.c.h.b16 %v1856
    %v2178 = vunpack.c.l.b16 %v1857
    %v2179 = vunpack.c.h.b16 %v1857
    %v2180 = vunpack.c.l.b16 %v1858
    %v2181 = vunpack.c.h.b16 %v1858
    %v2182 = vunpack.c.l.b16 %v1859
    %v2183 = vunpack.c.h.b16 %v1859
    %v2184 = vunpack.c.l.b16 %v1860
    %v2185 = vunpack.c.h.b16 %v1860
    %v2186 = vunpack.c.l.b16 %v1861
    %v2187 = vunpack.c.h.b16 %v1861
    %v2188 = vunpack.c.l.b16 %v1862
    %v2189 = vunpack.c.h.b16 %v1862
    %v2190 = vunpack.c.l.b16 %v1863
    %v2191 = vunpack.c.h.b16 %v1863
    %v2192 = vunpack.c.l.b16 %v1864
    %v2193 = vunpack.c.h.b16 %v1864
    %v2194 = vunpack.c.l.b16 %v1865
    %v2195 = vunpack.c.h.b16 %v1865
    %v2196 = vunpack.c.l.b16 %v1866
    %v2197 = vunpack.c.h.b16 %v1866
    %v2198 = vunpack.c.l.b16 %v1867
    %v2199 = vunpack.c.h.b16 %v1867
    %v2200 = vunpack.c.l.b16 %v1868
    %v2201 = vunpack.c.h.b16 %v1868
    %v2202 = vunpack.c.l.b16 %v1869
    %v2203 = vunpack.c.h.b16 %v1869
    %v2204 = vunpack.c.l.b16 %v1870
    %v2205 = vunpack.c.h.b16 %v1870
    %v2206 = vunpack.c.l.b16 %v1871
    %v2207 = vunpack.c.h.b16 %v1871
    %v2208 = vunpack.c.l.b16 %v1872
    %v2209 = vunpack.c.h.b16 %v1872
    %v2210 = vunpack.c.l.b16 %v1873
    %v2211 = vunpack.c.h.b16 %v1873
    %v2212 = vunpack.c.l.b16 %v1874
    %v2213 = vunpack.c.h.b16 %v1874
    %v2214 = vunpack.c.l.b16 %v1875
    %v2215 = vunpack.c.h.b16 %v1875
    %v2216 = vunpack.c.l.b16 %v1876
    %v2217 = vunpack.c.h.b16 %v1876
    %v2218 = vunpack.c.l.b16 %v1877
    %v2219 = vunpack.c.h.b16 %v1877
    %v2220 = vunpack.c.l.b16 %v1878
    %v2221 = vunpack.c.h.b16 %v1878
    %v2222 = vunpack.c.l.b16 %v1879
    %v2223 = vunpack.c.h.b16 %v1879
    %v2224 = vunpack.c.l.b16 %v1880
    %v2225 = vunpack.c.h.b16 %v1880
    %v2226 = vunpack.c.l.b16 %v1881
    %v2227 = vunpack.c.h.b16 %v1881
    %v2228 = vunpack.c.l.b16 %v1882
    %v2229 = vunpack.c.h.b16 %v1882
    %v2230 = vunpack.c.l.b16 %v1883
    %v2231 = vunpack.c.h.b16 %v1883
    %v2232 = vunpack.c.l.b16 %v1884
    %v2233 = vunpack.c.h.b16 %v1884
    %v2234 = vunpack.c.l.b16 %v1885
    %v2235 = vunpack.c.h.b16 %v1885
    %v2236 = vunpack.c.l.b16 %v1886
    %v2237 = vunpack.c.h.b16 %v1886
    %v2238 = vunpack.c.l.b16 %v1887
    %v2239 = vunpack.c.h.b16 %v1887
    %v2240 = vunpack.c.l.b16 %v1888
    %v2241 = vunpack.c.h.b16 %v1888
    %v2242 = vunpack.c.l.b16 %v1889
    %v2243 = vunpack.c.h.b16 %v1889
    %v2244 = vunpack.c.l.b16 %v1890
    %v2245 = vunpack.c.h.b16 %v1890
    %v2246 = vunpack.c.l.b16 %v1891
    %v2247 = vunpack.c.h.b16 %v1891
    %v2248 = vunpack.c.l.b16 %v1892
    %v2249 = vunpack.c.h.b16 %v1892
    %v2250 = vunpack.c.l.b16 %v1893
    %v2251 = vunpack.c.h.b16 %v1893
    %v2252 = vunpack.c.l.b16 %v1894
    %v2253 = vunpack.c.h.b16 %v1894
    %v2254 = vunpack.c.l.b16 %v1895
    %v2255 = vunpack.c.h.b16 %v1895
    %v2256 = vunpack.c.l.b16 %v1896
    %v2257 = vunpack.c.h.b16 %v1896
    %v2258 = vunpack.c.l.b16 %v1897
    %v2259 = vunpack.c.h.b16 %v1897
    %v2260 = vunpack.c.l.b16 %v1898
    %v2261 = vunpack.c.h.b16 %v1898
    %v2262 = vunpack.c.l.b16 %v1899
    %v2263 = vunpack.c.h.b16 %v1899
    %v2264 = vunpack.c.l.b16 %v1900
    %v2265 = vunpack.c.h.b16 %v1900
    %v2266 = vunpack.c.l.b16 %v1901
    %v2267 = vunpack.c.h.b16 %v1901
    %v2268 = vunpack.c.l.b16 %v1902
    %v2269 = vunpack.c.h.b16 %v1902
    %v2270 = vunpack.c.l.b16 %v1903
    %v2271 = vunpack.c.h.b16 %v1903
    %v2272 = vunpack.c.l.b16 %v1904
    %v2273 = vunpack.c.h.b16 %v1904
    %v2274 = vunpack.c.l.b16 %v1905
    %v2275 = vunpack.c.h.b16 %v1905
    %v2276 = vunpack.c.l.b16 %v1906
    %v2277 = vunpack.c.h.b16 %v1906
    %v2278 = vunpack.c.l.b16 %v1907
    %v2279 = vunpack.c.h.b16 %v1907
    %v2280 = vunpack.c.l.b16 %v1908
    %v2281 = vunpack.c.h.b16 %v1908
    %v2282 = vunpack.c.l.b16 %v1909
    %v2283 = vunpack.c.h.b16 %v1909
    %v2284 = vunpack.c.l.b16 %v1910
    %v2285 = vunpack.c.h.b16 %v1910
    %v2286 = vunpack.c.l.b16 %v1911
    %v2287 = vunpack.c.h.b16 %v1911
    %v2288 = vunpack.c.l.b16 %v1912
    %v2289 = vunpack.c.h.b16 %v1912
    %v2290 = vunpack.c.l.b16 %v1913
    %v2291 = vunpack.c.h.b16 %v1913
    %v2292 = vunpack.c.l.b16 %v1914
    %v2293 = vunpack.c.h.b16 %v1914
    %v2294 = vunpack.c.l.b16 %v1915
    %v2295 = vunpack.c.h.b16 %v1915
    %v2296 = vunpack.c.l.b16 %v1916
    %v2297 = vunpack.c.h.b16 %v1916
    %v2298 = vunpack.c.l.b16 %v1917
    %v2299 = vunpack.c.h.b16 %v1917
    %v2300 = vunpack.c.l.b16 %v1918
    %v2301 = vunpack.c.h.b16 %v1918
    %v2302 = vunpack.c.l.b16 %v1919
    %v2303 = vunpack.c.h.b16 %v1919
    %v2304 = vunpack.c.l.b16 %v1920
    %v2305 = vunpack.c.h.b16 %v1920
    %v2306 = vunpack.c.l.b16 %v1921
    %v2307 = vunpack.c.h.b16 %v1921
    %v2308 = vunpack.c.l.b16 %v1922
    %v2309 = vunpack.c.h.b16 %v1922
    %v2310 = vunpack.c.l.b16 %v1923
    %v2311 = vunpack.c.h.b16 %v1923
    %v2312 = vunpack.c.l.b16 %v1924
    %v2313 = vunpack.c.h.b16 %v1924
    %v2314 = vunpack.c.l.b16 %v1925
    %v2315 = vunpack.c.h.b16 %v1925
    %v2316 = vunpack.c.l.b16 %v1926
    %v2317 = vunpack.c.h.b16 %v1926
    %v2318 = vunpack.c.l.b16 %v1927
    %v2319 = vunpack.c.h.b16 %v1927
    %v2320 = vunpack.c.l.b16 %v1928
    %v2321 = vunpack.c.h.b16 %v1928
    %v2322 = vunpack.c.l.b16 %v1929
    %v2323 = vunpack.c.h.b16 %v1929
    %v2324 = vpack.c.b16 %v2072, %v2068
    %v2325 = vpack.c.b16 %v2073, %v2069
    %v2326 = vpack.c.b16 %v2074, %v2070
    %v2327 = vpack.c.b16 %v2075, %v2071
    %v2328 = vpack.c.b16 %v2080, %v2076
    %v2329 = vpack.c.b16 %v2081, %v2077
    %v2330 = vpack.c.b16 %v2082, %v2078
    %v2331 = vpack.c.b16 %v2083, %v2079
    %v2332 = vpack.c.b16 %v2088, %v2084
    %v2333 = vpack.c.b16 %v2089, %v2085
    %v2334 = vpack.c.b16 %v2090, %v2086
    %v2335 = vpack.c.b16 %v2091, %v2087
    %v2336 = vpack.c.b16 %v2096, %v2092
    %v2337 = vpack.c.b16 %v2097, %v2093
    %v2338 = vpack.c.b16 %v2098, %v2094
    %v2339 = vpack.c.b16 %v2099, %v2095
    %v2340 = vpack.c.b16 %v2104, %v2100
    %v2341 = vpack.c.b16 %v2105, %v2101
    %v2342 = vpack.c.b16 %v2106, %v2102
    %v2343 = vpack.c.b16 %v2107, %v2103
    %v2344 = vpack.c.b16 %v2112, %v2108
    %v2345 = vpack.c.b16 %v2113, %v2109
    %v2346 = vpack.c.b16 %v2114, %v2110
    %v2347 = vpack.c.b16 %v2115, %v2111
    %v2348 = vpack.c.b16 %v2120, %v2116
    %v2349 = vpack.c.b16 %v2121, %v2117
    %v2350 = vpack.c.b16 %v2122, %v2118
    %v2351 = vpack.c.b16 %v2123, %v2119
    %v2352 = vpack.c.b16 %v2128, %v2124
    %v2353 = vpack.c.b16 %v2129, %v2125
    %v2354 = vpack.c.b16 %v2130, %v2126
    %v2355 = vpack.c.b16 %v2131, %v2127
    %v2356 = vpack.c.b16 %v2136, %v2132
    %v2357 = vpack.c.b16 %v2137, %v2133
    %v2358 = vpack.c.b16 %v2138, %v2134
    %v2359 = vpack.c.b16 %v2139, %v2135
    %v2360 = vpack.c.b16 %v2144, %v2140
    %v2361 = vpack.c.b16 %v2145, %v2141
    %v2362 = vpack.c.b16 %v2146, %v2142
    %v2363 = vpack.c.b16 %v2147, %v2143
    %v2364 = vpack.c.b16 %v2152, %v2148
    %v2365 = vpack.c.b16 %v2153, %v2149
    %v2366 = vpack.c.b16 %v2154, %v2150
    %v2367 = vpack.c.b16 %v2155, %v2151
    %v2368 = vpack.c.b16 %v2160, %v2156
    %v2369 = vpack.c.b16 %v2161, %v2157
    %v2370 = vpack.c.b16 %v2162, %v2158
    %v2371 = vpack.c.b16 %v2163, %v2159
    %v2372 = vpack.c.b16 %v2168, %v2164
    %v2373 = vpack.c.b16 %v2169, %v2165
    %v2374 = vpack.c.b16 %v2170, %v2166
    %v2375 = vpack.c.b16 %v2171, %v2167
    %v2376 = vpack.c.b16 %v2176, %v2172
    %v2377 = vpack.c.b16 %v2177, %v2173
    %v2378 = vpack.c.b16 %v2178, %v2174
    %v2379 = vpack.c.b16 %v2179, %v2175
    %v2380 = vpack.c.b16 %v2184, %v2180
    %v2381 = vpack.c.b16 %v2185, %v2181
    %v2382 = vpack.c.b16 %v2186, %v2182
    %v2383 = vpack.c.b16 %v2187, %v2183
    %v2384 = vpack.c.b16 %v2192, %v2188
    %v2385 = vpack.c.b16 %v2193, %v2189
    %v2386 = vpack.c.b16 %v2194, %v2190
    %v2387 = vpack.c.b16 %v2195, %v2191
    %v2388 = vpack.c.b16 %v2200, %v2196
    %v2389 = vpack.c.b16 %v2201, %v2197
    %v2390 = vpack.c.b16 %v2202, %v2198
    %v2391 = vpack.c.b16 %v2203, %v2199
    %v2392 = vpack.c.b16 %v2208, %v2204
    %v2393 = vpack.c.b16 %v2209, %v2205
    %v2394 = vpack.c.b16 %v2210, %v2206
    %v2395 = vpack.c.b16 %v2211, %v2207
    %v2396 = vpack.c.b16 %v2216, %v2212
    %v2397 = vpack.c.b16 %v2217, %v2213
    %v2398 = vpack.c.b16 %v2218, %v2214
    %v2399 = vpack.c.b16 %v2219, %v2215
    %v2400 = vpack.c.b16 %v2224, %v2220
    %v2401 = vpack.c.b16 %v2225, %v2221
    %v2402 = vpack.c.b16 %v2226, %v2222
    %v2403 = vpack.c.b16 %v2227, %v2223
    %v2404 = vpack.c.b16 %v2232, %v2228
    %v2405 = vpack.c.b16 %v2233, %v2229
    %v2406 = vpack.c.b16 %v2234, %v2230
    %v2407 = vpack.c.b16 %v2235, %v2231
    %v2408 = vpack.c.b16 %v2240, %v2236
    %v2409 = vpack.c.b16 %v2241, %v2237
    %v2410 = vpack.c.b16 %v2242, %v2238
    %v2411 = vpack.c.b16 %v2243, %v2239
    %v2412 = vpack.c.b16 %v2248, %v2244
    %v2413 = vpack.c.b16 %v2249, %v2245
    %v2414 = vpack.c.b16 %v2250, %v2246
    %v2415 = vpack.c.b16 %v2251, %v2247
    %v2416 = vpack.c.b16 %v2256, %v2252
    %v2417 = vpack.c.b16 %v2257, %v2253
    %v2418 = vpack.c.b16 %v2258, %v2254
    %v2419 = vpack.c.b16 %v2259, %v2255
    %v2420 = vpack.c.b16 %v2264, %v2260
    %v2421 = vpack.c.b16 %v2265, %v2261
    %v2422 = vpack.c.b16 %v2266, %v2262
    %v2423 = vpack.c.b16 %v2267, %v2263
    %v2424 = vpack.c.b16 %v2272, %v2268
    %v2425 = vpack.c.b16 %v2273, %v2269
    %v2426 = vpack.c.b16 %v2274, %v2270
    %v2427 = vpack.c.b16 %v2275, %v2271
    %v2428 = vpack.c.b16 %v2280, %v2276
    %v2429 = vpack.c.b16 %v2281, %v2277
    %v2430 = vpack.c.b16 %v2282, %v2278
    %v2431 = vpack.c.b16 %v2283, %v2279
    %v2432 = vpack.c.b16 %v2288, %v2284
    %v2433 = vpack.c.b16 %v2289, %v2285
    %v2434 = vpack.c.b16 %v2290, %v2286
    %v2435 = vpack.c.b16 %v2291, %v2287
    %v2436 = vpack.c.b16 %v2296, %v2292
    %v2437 = vpack.c.b16 %v2297, %v2293
    %v2438 = vpack.c.b16 %v2298, %v2294
    %v2439 = vpack.c.b16 %v2299, %v2295
    %v2440 = vpack.c.b16 %v2304, %v2300
    %v2441 = vpack.c.b16 %v2305, %v2301
    %v2442 = vpack.c.b16 %v2306, %v2302
    %v2443 = vpack.c.b16 %v2307, %v2303
    %v2444 = vpack.c.b16 %v2312, %v2308
    %v2445 = vpack.c.b16 %v2313, %v2309
    %v2446 = vpack.c.b16 %v2314, %v2310
    %v2447 = vpack.c.b16 %v2315, %v2311
    %v2448 = vpack.c.b16 %v2320, %v2316
    %v2449 = vpack.c.b16 %v2321, %v2317
    %v2450 = vpack.c.b16 %v2322, %v2318
    %v2451 = vpack.c.b16 %v2323, %v2319
    %2580 = vmatpush.bf16.msra.mxu0 %v2352
    %2581 = vmatpush.bf16.msra.mxu0 %v2348
    %2582 = vmatpush.bf16.msra.mxu0 %v2344
    %2583 = vmatpush.bf16.msra.mxu0 %v2340
    %2584 = vmatpush.bf16.msra.mxu0 %v2336
    %2585 = vmatpush.bf16.msra.mxu0 %v2332
    %2586 = vmatpush.bf16.msra.mxu0 %v2328
    %2587 = vmatpush.bf16.msra.mxu0 %v2324
    %2588 = vmatmul.bf16.gmra.mxu0 %v1798
    %v2589 = vpop.f32.mrf.mxu0
    %v2590 = vadd.f32 %v1932, %v2589
    %v2591 = vpop.f32.mrf.mxu0
    %v2592 = vadd.f32 %v1932, %v2591
    %2593 = vdwg.mxu0
    %2594 = vmatpush.bf16.msra.mxu0 %v2384
    %2595 = vmatpush.bf16.msra.mxu0 %v2380
    %2596 = vmatpush.bf16.msra.mxu0 %v2376
    %2597 = vmatpush.bf16.msra.mxu0 %v2372
    %2598 = vmatpush.bf16.msra.mxu0 %v2368
    %2599 = vmatpush.bf16.msra.mxu0 %v2364
    %2600 = vmatpush.bf16.msra.mxu0 %v2360
    %2601 = vmatpush.bf16.msra.mxu0 %v2356
    %2602 = vmatmul.bf16.gmra.mxu0 %v1799
    %v2603 = vpop.f32.mrf.mxu0
    %v2604 = vadd.f32 %v2590, %v2603
    %v2605 = vpop.f32.mrf.mxu0
    %v2606 = vadd.f32 %v2592, %v2605
    %2607 = vdwg.mxu0
    %2608 = vmatpush.bf16.msra.mxu0 %v2416
    %2609 = vmatpush.bf16.msra.mxu0 %v2412
    %2610 = vmatpush.bf16.msra.mxu0 %v2408
    %2611 = vmatpush.bf16.msra.mxu0 %v2404
    %2612 = vmatpush.bf16.msra.mxu0 %v2400
    %2613 = vmatpush.bf16.msra.mxu0 %v2396
    %2614 = vmatpush.bf16.msra.mxu0 %v2392
    %2615 = vmatpush.bf16.msra.mxu0 %v2388
    %2616 = vmatmul.bf16.gmra.mxu0 %v1800
    %v2617 = vpop.f32.mrf.mxu0
    %v2618 = vadd.f32 %v2604, %v2617
    %v2619 = vpop.f32.mrf.mxu0
    %v2620 = vadd.f32 %v2606, %v2619
    %2621 = vdwg.mxu0
    %2622 = vmatpush.bf16.msra.mxu0 %v2448
    %2623 = vmatpush.bf16.msra.mxu0 %v2444
    %2624 = vmatpush.bf16.msra.mxu0 %v2440
    %2625 = vmatpush.bf16.msra.mxu0 %v2436
    %2626 = vmatpush.bf16.msra.mxu0 %v2432
    %2627 = vmatpush.bf16.msra.mxu0 %v2428
    %2628 = vmatpush.bf16.msra.mxu0 %v2424
    %2629 = vmatpush.bf16.msra.mxu0 %v2420
    %2630 = vmatmul.bf16.gmra.mxu0 %v1801
    %v2631 = vpop.f32.mrf.mxu0
    %v2632 = vadd.f32 %v2618, %v2631
    %v2633 = vpop.f32.mrf.mxu0
    %v2634 = vadd.f32 %v2620, %v2633
    %2635 = vdwg.mxu0
    %2636 = vmatpush.bf16.msra.mxu0 %v2353
    %2637 = vmatpush.bf16.msra.mxu0 %v2349
    %2638 = vmatpush.bf16.msra.mxu0 %v2345
    %2639 = vmatpush.bf16.msra.mxu0 %v2341
    %2640 = vmatpush.bf16.msra.mxu0 %v2337
    %2641 = vmatpush.bf16.msra.mxu0 %v2333
    %2642 = vmatpush.bf16.msra.mxu0 %v2329
    %2643 = vmatpush.bf16.msra.mxu0 %v2325
    %2644 = vmatmul.bf16.gmra.mxu0 %v1798
    %v2645 = vpop.f32.mrf.mxu0
    %v2646 = vadd.f32 %v1933, %v2645
    %v2647 = vpop.f32.mrf.mxu0
    %v2648 = vadd.f32 %v1933, %v2647
    %2649 = vdwg.mxu0
    %2650 = vmatpush.bf16.msra.mxu0 %v2385
    %2651 = vmatpush.bf16.msra.mxu0 %v2381
    %2652 = vmatpush.bf16.msra.mxu0 %v2377
    %2653 = vmatpush.bf16.msra.mxu0 %v2373
    %2654 = vmatpush.bf16.msra.mxu0 %v2369
    %2655 = vmatpush.bf16.msra.mxu0 %v2365
    %2656 = vmatpush.bf16.msra.mxu0 %v2361
    %2657 = vmatpush.bf16.msra.mxu0 %v2357
    %2658 = vmatmul.bf16.gmra.mxu0 %v1799
    %v2659 = vpop.f32.mrf.mxu0
    %v2660 = vadd.f32 %v2646, %v2659
    %v2661 = vpop.f32.mrf.mxu0
    %v2662 = vadd.f32 %v2648, %v2661
    %2663 = vdwg.mxu0
    %2664 = vmatpush.bf16.msra.mxu0 %v2417
    %2665 = vmatpush.bf16.msra.mxu0 %v2413
    %2666 = vmatpush.bf16.msra.mxu0 %v2409
    %2667 = vmatpush.bf16.msra.mxu0 %v2405
    %2668 = vmatpush.bf16.msra.mxu0 %v2401
    %2669 = vmatpush.bf16.msra.mxu0 %v2397
    %2670 = vmatpush.bf16.msra.mxu0 %v2393
    %2671 = vmatpush.bf16.msra.mxu0 %v2389
    %2672 = vmatmul.bf16.gmra.mxu0 %v1800
    %v2673 = vpop.f32.mrf.mxu0
    %v2674 = vadd.f32 %v2660, %v2673
    %v2675 = vpop.f32.mrf.mxu0
    %v2676 = vadd.f32 %v2662, %v2675
    %2677 = vdwg.mxu0
    %2678 = vmatpush.bf16.msra.mxu0 %v2449
    %2679 = vmatpush.bf16.msra.mxu0 %v2445
    %2680 = vmatpush.bf16.msra.mxu0 %v2441
    %2681 = vmatpush.bf16.msra.mxu0 %v2437
    %2682 = vmatpush.bf16.msra.mxu0 %v2433
    %2683 = vmatpush.bf16.msra.mxu0 %v2429
    %2684 = vmatpush.bf16.msra.mxu0 %v2425
    %2685 = vmatpush.bf16.msra.mxu0 %v2421
    %2686 = vmatmul.bf16.gmra.mxu0 %v1801
    %v2687 = vpop.f32.mrf.mxu0
    %v2688 = vadd.f32 %v2674, %v2687
    %v2689 = vpop.f32.mrf.mxu0
    %v2690 = vadd.f32 %v2676, %v2689
    %2691 = vdwg.mxu0
    %2692 = vmatpush.bf16.msra.mxu0 %v2354
    %2693 = vmatpush.bf16.msra.mxu0 %v2350
    %2694 = vmatpush.bf16.msra.mxu0 %v2346
    %2695 = vmatpush.bf16.msra.mxu0 %v2342
    %2696 = vmatpush.bf16.msra.mxu0 %v2338
    %2697 = vmatpush.bf16.msra.mxu0 %v2334
    %2698 = vmatpush.bf16.msra.mxu0 %v2330
    %2699 = vmatpush.bf16.msra.mxu0 %v2326
    %2700 = vmatmul.bf16.gmra.mxu0 %v1798
    %v2701 = vpop.f32.mrf.mxu0
    %v2702 = vadd.f32 %v1934, %v2701
    %v2703 = vpop.f32.mrf.mxu0
    %v2704 = vadd.f32 %v1934, %v2703
    %2705 = vdwg.mxu0
    %2706 = vmatpush.bf16.msra.mxu0 %v2386
    %2707 = vmatpush.bf16.msra.mxu0 %v2382
    %2708 = vmatpush.bf16.msra.mxu0 %v2378
    %2709 = vmatpush.bf16.msra.mxu0 %v2374
    %2710 = vmatpush.bf16.msra.mxu0 %v2370
    %2711 = vmatpush.bf16.msra.mxu0 %v2366
    %2712 = vmatpush.bf16.msra.mxu0 %v2362
    %2713 = vmatpush.bf16.msra.mxu0 %v2358
    %2714 = vmatmul.bf16.gmra.mxu0 %v1799
    %v2715 = vpop.f32.mrf.mxu0
    %v2716 = vadd.f32 %v2702, %v2715
    %v2717 = vpop.f32.mrf.mxu0
    %v2718 = vadd.f32 %v2704, %v2717
    %2719 = vdwg.mxu0
    %2720 = vmatpush.bf16.msra.mxu0 %v2418
    %2721 = vmatpush.bf16.msra.mxu0 %v2414
    %2722 = vmatpush.bf16.msra.mxu0 %v2410
    %2723 = vmatpush.bf16.msra.mxu0 %v2406
    %2724 = vmatpush.bf16.msra.mxu0 %v2402
    %2725 = vmatpush.bf16.msra.mxu0 %v2398
    %2726 = vmatpush.bf16.msra.mxu0 %v2394
    %2727 = vmatpush.bf16.msra.mxu0 %v2390
    %2728 = vmatmul.bf16.gmra.mxu0 %v1800
    %v2729 = vpop.f32.mrf.mxu0
    %v2730 = vadd.f32 %v2716, %v2729
    %v2731 = vpop.f32.mrf.mxu0
    %v2732 = vadd.f32 %v2718, %v2731
    %2733 = vdwg.mxu0
    %2734 = vmatpush.bf16.msra.mxu0 %v2450
    %2735 = vmatpush.bf16.msra.mxu0 %v2446
    %2736 = vmatpush.bf16.msra.mxu0 %v2442
    %2737 = vmatpush.bf16.msra.mxu0 %v2438
    %2738 = vmatpush.bf16.msra.mxu0 %v2434
    %2739 = vmatpush.bf16.msra.mxu0 %v2430
    %2740 = vmatpush.bf16.msra.mxu0 %v2426
    %2741 = vmatpush.bf16.msra.mxu0 %v2422
    %2742 = vmatmul.bf16.gmra.mxu0 %v1801
    %v2743 = vpop.f32.mrf.mxu0
    %v2744 = vadd.f32 %v2730, %v2743
    %v2745 = vpop.f32.mrf.mxu0
    %v2746 = vadd.f32 %v2732, %v2745
    %2747 = vdwg.mxu0
    %2748 = vmatpush.bf16.msra.mxu0 %v2355
    %2749 = vmatpush.bf16.msra.mxu0 %v2351
    %2750 = vmatpush.bf16.msra.mxu0 %v2347
    %2751 = vmatpush.bf16.msra.mxu0 %v2343
    %2752 = vmatpush.bf16.msra.mxu0 %v2339
    %2753 = vmatpush.bf16.msra.mxu0 %v2335
    %2754 = vmatpush.bf16.msra.mxu0 %v2331
    %2755 = vmatpush.bf16.msra.mxu0 %v2327
    %2756 = vmatmul.bf16.gmra.mxu0 %v1798
    %v2757 = vpop.f32.mrf.mxu0
    %v2758 = vadd.f32 %v1935, %v2757
    %v2759 = vpop.f32.mrf.mxu0
    %v2760 = vadd.f32 %v1935, %v2759
    %2761 = vdwg.mxu0
    %2762 = vmatpush.bf16.msra.mxu0 %v2387
    %2763 = vmatpush.bf16.msra.mxu0 %v2383
    %2764 = vmatpush.bf16.msra.mxu0 %v2379
    %2765 = vmatpush.bf16.msra.mxu0 %v2375
    %2766 = vmatpush.bf16.msra.mxu0 %v2371
    %2767 = vmatpush.bf16.msra.mxu0 %v2367
    %2768 = vmatpush.bf16.msra.mxu0 %v2363
    %2769 = vmatpush.bf16.msra.mxu0 %v2359
    %2770 = vmatmul.bf16.gmra.mxu0 %v1799
    %v2771 = vpop.f32.mrf.mxu0
    %v2772 = vadd.f32 %v2758, %v2771
    %v2773 = vpop.f32.mrf.mxu0
    %v2774 = vadd.f32 %v2760, %v2773
    %2775 = vdwg.mxu0
    %2776 = vmatpush.bf16.msra.mxu0 %v2419
    %2777 = vmatpush.bf16.msra.mxu0 %v2415
    %2778 = vmatpush.bf16.msra.mxu0 %v2411
    %2779 = vmatpush.bf16.msra.mxu0 %v2407
    %2780 = vmatpush.bf16.msra.mxu0 %v2403
    %2781 = vmatpush.bf16.msra.mxu0 %v2399
    %2782 = vmatpush.bf16.msra.mxu0 %v2395
    %2783 = vmatpush.bf16.msra.mxu0 %v2391
    %2784 = vmatmul.bf16.gmra.mxu0 %v1800
    %v2785 = vpop.f32.mrf.mxu0
    %v2786 = vadd.f32 %v2772, %v2785
    %v2787 = vpop.f32.mrf.mxu0
    %v2788 = vadd.f32 %v2774, %v2787
    %2789 = vdwg.mxu0
    %2790 = vmatpush.bf16.msra.mxu0 %v2451
    %2791 = vmatpush.bf16.msra.mxu0 %v2447
    %2792 = vmatpush.bf16.msra.mxu0 %v2443
    %2793 = vmatpush.bf16.msra.mxu0 %v2439
    %2794 = vmatpush.bf16.msra.mxu0 %v2435
    %2795 = vmatpush.bf16.msra.mxu0 %v2431
    %2796 = vmatpush.bf16.msra.mxu0 %v2427
    %2797 = vmatpush.bf16.msra.mxu0 %v2423
    %2798 = vmatmul.bf16.gmra.mxu0 %v1801
    %v2799 = vpop.f32.mrf.mxu0
    %v2800 = vadd.f32 %v2786, %v2799
    %v2801 = vpop.f32.mrf.mxu0
    %v2802 = vadd.f32 %v2788, %v2801
    %2803 = vdwg.mxu0
    %v2804 = vmax.f32 %v2632, 0.0
    %v2805 = vmax.f32 %v2688, 0.0
    %v2806 = vmax.f32 %v2744, 0.0
    %v2807 = vmax.f32 %v2800, 0.0
    %v2808 = vmax.f32 %v2634, 0.0
    %v2809 = vmax.f32 %v2690, 0.0
    %v2810 = vmax.f32 %v2746, 0.0
    %v2811 = vmax.f32 %v2802, 0.0
    %v2812 = vpack.c.bf16 %v2808, %v2804
    %v2813 = vpack.c.bf16 %v2809, %v2805
    %v2814 = vpack.c.bf16 %v2810, %v2806
    %v2815 = vpack.c.bf16 %v2811, %v2807
    %v2816 = vld [vmem:[#allocation11] sm:$0xf]
    %v2817 = vld [vmem:[#allocation11 + $0x4] sm:$0xf]
    %v2818 = vld [vmem:[#allocation11 + $0x8] sm:$0xf]
    %v2819 = vld [vmem:[#allocation11 + $0xc] sm:$0xf]
    %v2820 = vld [vmem:[#allocation11 + $0x10] sm:$0xf]
    %v2821 = vld [vmem:[#allocation11 + $0x14] sm:$0xf]
    %v2822 = vld [vmem:[#allocation11 + $0x18] sm:$0xf]
    %v2823 = vld [vmem:[#allocation11 + $0x1c] sm:$0xf]
    %v2824 = vld [vmem:[#allocation11 + $0x20] sm:$0xf]
    %v2825 = vld [vmem:[#allocation11 + $0x24] sm:$0xf]
    %v2826 = vld [vmem:[#allocation11 + $0x28] sm:$0xf]
    %v2827 = vld [vmem:[#allocation11 + $0x2c] sm:$0xf]
    %v2828 = vld [vmem:[#allocation11 + $0x30] sm:$0xf]
    %v2829 = vld [vmem:[#allocation11 + $0x34] sm:$0xf]
    %v2830 = vld [vmem:[#allocation11 + $0x38] sm:$0xf]
    %v2831 = vld [vmem:[#allocation11 + $0x3c] sm:$0xf]
    %v2832 = vld [vmem:[#allocation11 + $0x40] sm:$0xf]
    %v2833 = vld [vmem:[#allocation11 + $0x44] sm:$0xf]
    %v2834 = vld [vmem:[#allocation11 + $0x48] sm:$0xf]
    %v2835 = vld [vmem:[#allocation11 + $0x4c] sm:$0xf]
    %v2836 = vld [vmem:[#allocation11 + $0x50] sm:$0xf]
    %v2837 = vld [vmem:[#allocation11 + $0x54] sm:$0xf]
    %v2838 = vld [vmem:[#allocation11 + $0x58] sm:$0xf]
    %v2839 = vld [vmem:[#allocation11 + $0x5c] sm:$0xf]
    %v2840 = vld [vmem:[#allocation11 + $0x60] sm:$0xf]
    %v2841 = vld [vmem:[#allocation11 + $0x64] sm:$0xf]
    %v2842 = vld [vmem:[#allocation11 + $0x68] sm:$0xf]
    %v2843 = vld [vmem:[#allocation11 + $0x6c] sm:$0xf]
    %v2844 = vld [vmem:[#allocation11 + $0x70] sm:$0xf]
    %v2845 = vld [vmem:[#allocation11 + $0x74] sm:$0xf]
    %v2846 = vld [vmem:[#allocation11 + $0x78] sm:$0xf]
    %v2847 = vld [vmem:[#allocation11 + $0x7c] sm:$0xf]
    %v2848 = vld [vmem:[#allocation11 + $0x80] sm:$0xf]
    %v2849 = vld [vmem:[#allocation11 + $0x84] sm:$0xf]
    %v2850 = vld [vmem:[#allocation11 + $0x88] sm:$0xf]
    %v2851 = vld [vmem:[#allocation11 + $0x8c] sm:$0xf]
    %v2852 = vld [vmem:[#allocation11 + $0x90] sm:$0xf]
    %v2853 = vld [vmem:[#allocation11 + $0x94] sm:$0xf]
    %v2854 = vld [vmem:[#allocation11 + $0x98] sm:$0xf]
    %v2855 = vld [vmem:[#allocation11 + $0x9c] sm:$0xf]
    %v2856 = vld [vmem:[#allocation11 + $0xa0] sm:$0xf]
    %v2857 = vld [vmem:[#allocation11 + $0xa4] sm:$0xf]
    %v2858 = vld [vmem:[#allocation11 + $0xa8] sm:$0xf]
    %v2859 = vld [vmem:[#allocation11 + $0xac] sm:$0xf]
    %v2860 = vld [vmem:[#allocation11 + $0xb0] sm:$0xf]
    %v2861 = vld [vmem:[#allocation11 + $0xb4] sm:$0xf]
    %v2862 = vld [vmem:[#allocation11 + $0xb8] sm:$0xf]
    %v2863 = vld [vmem:[#allocation11 + $0xbc] sm:$0xf]
    %v2864 = vld [vmem:[#allocation11 + $0xc0] sm:$0xf]
    %v2865 = vld [vmem:[#allocation11 + $0xc4] sm:$0xf]
    %v2866 = vld [vmem:[#allocation11 + $0xc8] sm:$0xf]
    %v2867 = vld [vmem:[#allocation11 + $0xcc] sm:$0xf]
    %v2868 = vld [vmem:[#allocation11 + $0xd0] sm:$0xf]
    %v2869 = vld [vmem:[#allocation11 + $0xd4] sm:$0xf]
    %v2870 = vld [vmem:[#allocation11 + $0xd8] sm:$0xf]
    %v2871 = vld [vmem:[#allocation11 + $0xdc] sm:$0xf]
    %v2872 = vld [vmem:[#allocation11 + $0xe0] sm:$0xf]
    %v2873 = vld [vmem:[#allocation11 + $0xe4] sm:$0xf]
    %v2874 = vld [vmem:[#allocation11 + $0xe8] sm:$0xf]
    %v2875 = vld [vmem:[#allocation11 + $0xec] sm:$0xf]
    %v2876 = vld [vmem:[#allocation11 + $0xf0] sm:$0xf]
    %v2877 = vld [vmem:[#allocation11 + $0xf4] sm:$0xf]
    %v2878 = vld [vmem:[#allocation11 + $0xf8] sm:$0xf]
    %v2879 = vld [vmem:[#allocation11 + $0xfc] sm:$0xf]
    %v2880 = vld [vmem:[%s6] sm:$0x1]
    %v2882 = vperm.slane %v2880, 0
    %v2948 = vunpack.c.l.b16 %v2816
    %v2949 = vunpack.c.l.b16 %v2817
    %v2950 = vunpack.c.l.b16 %v2818
    %v2951 = vunpack.c.l.b16 %v2819
    %v2952 = vunpack.c.l.b16 %v2820
    %v2953 = vunpack.c.l.b16 %v2821
    %v2954 = vunpack.c.l.b16 %v2822
    %v2955 = vunpack.c.l.b16 %v2823
    %v2956 = vunpack.c.l.b16 %v2824
    %v2957 = vunpack.c.l.b16 %v2825
    %v2958 = vunpack.c.l.b16 %v2826
    %v2959 = vunpack.c.l.b16 %v2827
    %v2960 = vunpack.c.l.b16 %v2828
    %v2961 = vunpack.c.l.b16 %v2829
    %v2962 = vunpack.c.l.b16 %v2830
    %v2963 = vunpack.c.l.b16 %v2831
    %v2964 = vunpack.c.l.b16 %v2832
    %v2965 = vunpack.c.l.b16 %v2833
    %v2966 = vunpack.c.l.b16 %v2834
    %v2967 = vunpack.c.l.b16 %v2835
    %v2968 = vunpack.c.l.b16 %v2836
    %v2969 = vunpack.c.l.b16 %v2837
    %v2970 = vunpack.c.l.b16 %v2838
    %v2971 = vunpack.c.l.b16 %v2839
    %v2972 = vunpack.c.l.b16 %v2840
    %v2973 = vunpack.c.l.b16 %v2841
    %v2974 = vunpack.c.l.b16 %v2842
    %v2975 = vunpack.c.l.b16 %v2843
    %v2976 = vunpack.c.l.b16 %v2844
    %v2977 = vunpack.c.l.b16 %v2845
    %v2978 = vunpack.c.l.b16 %v2846
    %v2979 = vunpack.c.l.b16 %v2847
    %v2980 = vunpack.c.l.b16 %v2848
    %v2981 = vunpack.c.l.b16 %v2849
    %v2982 = vunpack.c.l.b16 %v2850
    %v2983 = vunpack.c.l.b16 %v2851
    %v2984 = vunpack.c.l.b16 %v2852
    %v2985 = vunpack.c.l.b16 %v2853
    %v2986 = vunpack.c.l.b16 %v2854
    %v2987 = vunpack.c.l.b16 %v2855
    %v2988 = vunpack.c.l.b16 %v2856
    %v2989 = vunpack.c.l.b16 %v2857
    %v2990 = vunpack.c.l.b16 %v2858
    %v2991 = vunpack.c.l.b16 %v2859
    %v2992 = vunpack.c.l.b16 %v2860
    %v2993 = vunpack.c.l.b16 %v2861
    %v2994 = vunpack.c.l.b16 %v2862
    %v2995 = vunpack.c.l.b16 %v2863
    %v2996 = vunpack.c.l.b16 %v2864
    %v2997 = vunpack.c.l.b16 %v2865
    %v2998 = vunpack.c.l.b16 %v2866
    %v2999 = vunpack.c.l.b16 %v2867
    %v3000 = vunpack.c.l.b16 %v2868
    %v3001 = vunpack.c.l.b16 %v2869
    %v3002 = vunpack.c.l.b16 %v2870
    %v3003 = vunpack.c.l.b16 %v2871
    %v3004 = vunpack.c.l.b16 %v2872
    %v3005 = vunpack.c.l.b16 %v2873
    %v3006 = vunpack.c.l.b16 %v2874
    %v3007 = vunpack.c.l.b16 %v2875
    %v3008 = vunpack.c.l.b16 %v2876
    %v3009 = vunpack.c.l.b16 %v2877
    %v3010 = vunpack.c.l.b16 %v2878
    %v3011 = vunpack.c.l.b16 %v2879
    %v3012 = vpack.c.b16 %v2949, %v2948
    %v3013 = vpack.c.b16 %v2951, %v2950
    %v3014 = vpack.c.b16 %v2953, %v2952
    %v3015 = vpack.c.b16 %v2955, %v2954
    %v3016 = vpack.c.b16 %v2957, %v2956
    %v3017 = vpack.c.b16 %v2959, %v2958
    %v3018 = vpack.c.b16 %v2961, %v2960
    %v3019 = vpack.c.b16 %v2963, %v2962
    %v3020 = vpack.c.b16 %v2965, %v2964
    %v3021 = vpack.c.b16 %v2967, %v2966
    %v3022 = vpack.c.b16 %v2969, %v2968
    %v3023 = vpack.c.b16 %v2971, %v2970
    %v3024 = vpack.c.b16 %v2973, %v2972
    %v3025 = vpack.c.b16 %v2975, %v2974
    %v3026 = vpack.c.b16 %v2977, %v2976
    %v3027 = vpack.c.b16 %v2979, %v2978
    %v3028 = vpack.c.b16 %v2981, %v2980
    %v3029 = vpack.c.b16 %v2983, %v2982
    %v3030 = vpack.c.b16 %v2985, %v2984
    %v3031 = vpack.c.b16 %v2987, %v2986
    %v3032 = vpack.c.b16 %v2989, %v2988
    %v3033 = vpack.c.b16 %v2991, %v2990
    %v3034 = vpack.c.b16 %v2993, %v2992
    %v3035 = vpack.c.b16 %v2995, %v2994
    %v3036 = vpack.c.b16 %v2997, %v2996
    %v3037 = vpack.c.b16 %v2999, %v2998
    %v3038 = vpack.c.b16 %v3001, %v3000
    %v3039 = vpack.c.b16 %v3003, %v3002
    %v3040 = vpack.c.b16 %v3005, %v3004
    %v3041 = vpack.c.b16 %v3007, %v3006
    %v3042 = vpack.c.b16 %v3009, %v3008
    %v3043 = vpack.c.b16 %v3011, %v3010
    %3076 = vmatpush.bf16.msra.mxu0 %v3019
    %3077 = vmatpush.bf16.msra.mxu0 %v3018
    %3078 = vmatpush.bf16.msra.mxu0 %v3017
    %3079 = vmatpush.bf16.msra.mxu0 %v3016
    %3080 = vmatpush.bf16.msra.mxu0 %v3015
    %3081 = vmatpush.bf16.msra.mxu0 %v3014
    %3082 = vmatpush.bf16.msra.mxu0 %v3013
    %3083 = vmatpush.bf16.msra.mxu0 %v3012
    %3084 = vmatmul.bf16.gmra.mxu0 %v2812
    %v3085 = vpop.f32.mrf.mxu0
    %v3086 = vadd.f32 %v2882, %v3085
    %v3087 = vpop.f32.mrf.mxu0
    %v3088 = vadd.f32 %v2882, %v3087
    %3089 = vdwg.mxu0
    %3090 = vmatpush.bf16.msra.mxu0 %v3027
    %3091 = vmatpush.bf16.msra.mxu0 %v3026
    %3092 = vmatpush.bf16.msra.mxu0 %v3025
    %3093 = vmatpush.bf16.msra.mxu0 %v3024
    %3094 = vmatpush.bf16.msra.mxu0 %v3023
    %3095 = vmatpush.bf16.msra.mxu0 %v3022
    %3096 = vmatpush.bf16.msra.mxu0 %v3021
    %3097 = vmatpush.bf16.msra.mxu0 %v3020
    %3098 = vmatmul.bf16.gmra.mxu0 %v2813
    %v3099 = vpop.f32.mrf.mxu0
    %v3100 = vadd.f32 %v3086, %v3099
    %v3101 = vpop.f32.mrf.mxu0
    %v3102 = vadd.f32 %v3088, %v3101
    %3103 = vdwg.mxu0
    %3104 = vmatpush.bf16.msra.mxu0 %v3035
    %3105 = vmatpush.bf16.msra.mxu0 %v3034
    %3106 = vmatpush.bf16.msra.mxu0 %v3033
    %3107 = vmatpush.bf16.msra.mxu0 %v3032
    %3108 = vmatpush.bf16.msra.mxu0 %v3031
    %3109 = vmatpush.bf16.msra.mxu0 %v3030
    %3110 = vmatpush.bf16.msra.mxu0 %v3029
    %3111 = vmatpush.bf16.msra.mxu0 %v3028
    %3112 = vmatmul.bf16.gmra.mxu0 %v2814
    %v3113 = vpop.f32.mrf.mxu0
    %v3114 = vadd.f32 %v3100, %v3113
    %v3115 = vpop.f32.mrf.mxu0
    %v3116 = vadd.f32 %v3102, %v3115
    %3117 = vdwg.mxu0
    %3118 = vmatpush.bf16.msra.mxu0 %v3043
    %3119 = vmatpush.bf16.msra.mxu0 %v3042
    %3120 = vmatpush.bf16.msra.mxu0 %v3041
    %3121 = vmatpush.bf16.msra.mxu0 %v3040
    %3122 = vmatpush.bf16.msra.mxu0 %v3039
    %3123 = vmatpush.bf16.msra.mxu0 %v3038
    %3124 = vmatpush.bf16.msra.mxu0 %v3037
    %3125 = vmatpush.bf16.msra.mxu0 %v3036
    %3126 = vmatmul.bf16.gmra.mxu0 %v2815
    %v3127 = vpop.f32.mrf.mxu0
    %v3128 = vadd.f32 %v3114, %v3127
    %v3129 = vpop.f32.mrf.mxu0
    %v3130 = vadd.f32 %v3116, %v3129
    %3131 = vdwg.mxu0
    %v3132 = vpack.c.bf16 %v3128, %v3128
    %v3133 = vpack.c.bf16 %v3130, %v3130
    %3134 = vst [vmem:[#allocation13] sm:$0xf] %v3132
    %3135 = vst [vmem:[#allocation13 + $0x4] sm:$0xf] %v3133
    // Predicated region
    $region54: #{tpu_custom_call.1} parent=1 // pred_check
      _
    $region55: #{tpu_custom_call.1} parent=1 // pred_check_branch
      %3137 = sbr.rel (0) target = $region57
    $region56: #{tpu_custom_call.1} parent=1 // pred_region
      %3139 = vsyncadd [#allocation4], 0
      %s3140 = sshll.u32 [#allocation13], 4
      %s3141 = int_to_ptr.vmem [resolvable:$true] %s3140
      %s3142 = sshll.u32 %s7, 4
      %s3143 = int_to_ptr.hbm [resolvable:$true] %s3142
      %3148 = dma.vmem_to_hbm [thread:$0]  %s3141, 128, %s3143, [#allocation4], 64, 64, 4
    $region57: #{tpu_custom_call.1} parent=1 // pred_fallthru
      _
    // Predicated region
    $region58: #{tpu_custom_call.1} parent=1 // pred_check
      _
    $region59: #{tpu_custom_call.1} parent=1 // pred_check_branch
      %3150 = sbr.rel (0) target = $region61
    $region60: #{tpu_custom_call.1} parent=1 // pred_region
      %3152 = dma.done [#allocation4], 128
    $region61: #{tpu_custom_call.1} parent=1 // pred_fallthru
      _
    %3153 = vsyncpa [#allocation3], 1
    %3154 = vsyncpa [#allocation6], 1
    %3155 = vsyncpa [#allocation9], 1
    %3156 = vsyncpa [#allocation12], 1
    %3157 = vsyncpa [#allocation4], 1

</llo_original>
